<compile_context>
chip_gen: v5e
topology: v5e:2x2
jax: 0.10.0
libtpu: 0.0.40
codegen_flags: <defaults>
</compile_context>

<pallas_src>
import functools

import jax
import jax.numpy as jnp
from jax import lax
from jax.experimental import pallas as pl
from jax.experimental.pallas import tpu as pltpu


def _round_up(x, m):
    return (x + m - 1) // m * m


def _pick_row_tile(H):
    """Largest row tile that divides H and still yields >= 2 chunks."""
    for tr in (64, 32, 16, 8, 4, 2, 1):
        if H % tr == 0 and H // tr >= 2:
            return tr
    return H


# ----------------------------------------------------------------------------
# Pallas kernel: 3x3 "same" conv (stride 1) + bias + LeakyReLU(0.2)
# One (Lq, 9*Cin) x (9*Cin, Cout) bf16 matmul per (batch, row-chunk) tile.
# ----------------------------------------------------------------------------
def _conv3x3_lrelu_kernel(x_ref, top_ref, bot_ref, w_ref, b_ref, o_ref,
                          xpad_ref, *, TR, W, Wpp, Lq):
    # x_ref:   (1, TR, W, Cin) f32   rows of this chunk
    # top_ref: (1, 1,  W, Cin) f32   row above the chunk (zeros at image top)
    # bot_ref: (1, 1,  W, Cin) f32   row below the chunk (zeros at image bottom)
    # w_ref:   (9*Cin, Cout)   bf16  im2col-stacked weights, K index = k*Cin+ci
    # b_ref:   (1, Cout)       f32
    # o_ref:   (1, TR, W, Cout) f32
    # xpad_ref:(Lflat, Cin)    bf16  zero-padded, row-flattened chunk (+halo)

    # ---- build zero-padded, row-flattened chunk in VMEM (halo in-kernel) ----
    xpad_ref[...] = jnp.zeros_like(xpad_ref)
    xpad_ref[pl.ds(1, W), :] = top_ref[0, 0].astype(jnp.bfloat16)
    for r in range(TR):
        xpad_ref[pl.ds((r + 1) * Wpp + 1, W), :] = \
            x_ref[0, r].astype(jnp.bfloat16)
    xpad_ref[pl.ds((TR + 1) * Wpp + 1, W), :] = bot_ref[0, 0].astype(jnp.bfloat16)

    # ---- im2col: stack the 9 shifted views along K -> single MXU matmul -----
    taps = [xpad_ref[pl.ds(dy * Wpp + dx, Lq), :]
            for dy in range(3) for dx in range(3)]
    xs = jnp.concatenate(taps, axis=-1)                      # (Lq, 9*Cin) bf16
    acc = jnp.dot(xs, w_ref[...], preferred_element_type=jnp.float32)

    # ---- f32 epilogue: bias + LeakyReLU(0.2) --------------------------------
    acc = acc + b_ref[...]                                   # (1, Cout) bcast
    acc = jnp.where(acc >= 0.0, acc, 0.2 * acc)

    # ---- store only the valid interior (row starts are multiples of 8) ------
    for r in range(TR):
        o_ref[0, r] = acc[r * Wpp:r * Wpp + W, :]


# ----------------------------------------------------------------------------
# Wrapper: ConvBlock forward, NCHW in / NCHW out (matches the PyTorch module)
# ----------------------------------------------------------------------------
def conv_block(x_nchw, w_flat, b):
    x = jnp.transpose(x_nchw, (0, 2, 3, 1)).astype(jnp.float32)   # -> NHWC
    N, H, W, Cin = x.shape
    Cout = w_flat.shape[-1]

    TR = _pick_row_tile(H)                 # rows per grid step
    nc = H // TR                           # row chunks
    Wpp = _round_up(W + 2, 8)              # padded row stride (sublane aligned)
    Lq = TR * Wpp                          # matmul M dim (incl. pad columns)
    Lflat = _round_up((TR + 2) * Wpp + 2, 8)

    # Halo rows (row above / below each chunk); zeros at the image border.
    zrow = jnp.zeros((N, 1, W, Cin), x.dtype)
    if nc > 1:
        tops = jnp.concatenate([zrow, x[:, TR - 1:H - 1:TR, :, :]], axis=1)
        bots = jnp.concatenate([x[:, TR:H:TR, :, :], zrow], axis=1)
    else:
        tops, bots = zrow, zrow            # single chunk: both halos are zero

    kernel = functools.partial(_conv3x3_lrelu_kernel,
                               TR=TR, W=W, Wpp=Wpp, Lq=Lq)
    out = pl.pallas_call(
        kernel,
        out_shape=jax.ShapeDtypeStruct((N, H, W, Cout), jnp.float32),
        grid=(N, nc),
        in_specs=[
            pl.BlockSpec((1, TR, W, Cin), lambda n, c: (n, c, 0, 0)),
            pl.BlockSpec((1, 1, W, Cin), lambda n, c: (n, c, 0, 0)),
            pl.BlockSpec((1, 1, W, Cin), lambda n, c: (n, c, 0, 0)),
            pl.BlockSpec((9 * Cin, Cout), lambda n, c: (0, 0)),
            pl.BlockSpec((1, Cout), lambda n, c: (0, 0)),
        ],
        out_specs=pl.BlockSpec((1, TR, W, Cout), lambda n, c: (n, c, 0, 0)),
        scratch_shapes=[pltpu.VMEM((Lflat, Cin), jnp.bfloat16)],
        compiler_params=pltpu.CompilerParams(
            dimension_semantics=("parallel", "parallel")),
    )(x, tops, bots, w_flat, b)

    return jnp.transpose(out, (0, 3, 1, 2))                       # -> NCHW


# ----------------------------------------------------------------------------
# Parameters (deterministic init matching nn.Conv2d's default fan-in bound).
# w_flat[k*Cin + ci, co] == torch_weight[co, ci, dy, dx] with k = 3*dy + dx.
# ----------------------------------------------------------------------------
def init_conv_block_params(key, cin, cout):
    kw, kb = jax.random.split(key)
    bound = float(1.0 / (cin * 9) ** 0.5)
    w9 = jax.random.uniform(kw, (9, cin, cout), jnp.float32, -bound, bound)
    w_flat = w9.reshape(9 * cin, cout).astype(jnp.bfloat16)   # bf16 MXU operands
    bias = jax.random.uniform(kb, (1, cout), jnp.float32, -bound, bound)
    return w_flat, bias


# ----------------------------------------------------------------------------
# Pure-JAX reference (f32, HIGHEST precision) for a correctness check.
# ----------------------------------------------------------------------------
def conv_block_reference(x_nchw, w_flat, b):
    Cout = w_flat.shape[-1]
    Cin = w_flat.shape[0] // 9
    w_hwio = w_flat.astype(jnp.float32).reshape(3, 3, Cin, Cout)   # (dy,dx,ci,co)
    x = jnp.transpose(x_nchw, (0, 2, 3, 1)).astype(jnp.float32)
    y = lax.conv_general_dilated(
        x, w_hwio, window_strides=(1, 1), padding="SAME",
        dimension_numbers=("NHWC", "HWIO", "NHWC"),
        precision=lax.Precision.HIGHEST)
    y = y + b.reshape(1, 1, 1, Cout)
    y = jnp.where(y >= 0.0, y, 0.2 * y)
    return jnp.transpose(y, (0, 3, 1, 2))


# ----------------------------------------------------------------------------
if __name__ == "__main__":
    key = jax.random.PRNGKey(0)
    kx, kp = jax.random.split(key)

    N, Cin, H, W = 2, 4, 16, 16            # ConvBlock(ndims=2, 4 -> 16)
    Cout = 16
    x = jax.random.normal(kx, (N, Cin, H, W), jnp.float32)
    w_flat, bias = init_conv_block_params(kp, Cin, Cout)

    fwd = jax.jit(conv_block)
    out = jax.block_until_ready(fwd(x, w_flat, bias))

    assert out.shape == (N, Cout, H, W), out.shape
    assert bool(jnp.all(jnp.isfinite(out)))

    ref = conv_block_reference(x, w_flat, bias)
    assert bool(jnp.allclose(out, ref, rtol=5e-2, atol=5e-2)), \
        float(jnp.max(jnp.abs(out - ref)))

    print("KERNEL_OK")
</pallas_src>

<mosaic_0001>
module attributes {stable_mosaic.version = 11 : i64} {
  func.func @_conv3x3_lrelu_kernel(%arg0: i32, %arg1: i32, %arg2: memref<1x8x16x4xf32, #tpu.memory_space<vmem>>, %arg3: memref<1x1x16x4xf32, #tpu.memory_space<vmem>>, %arg4: memref<1x1x16x4xf32, #tpu.memory_space<vmem>>, %arg5: memref<36x16xbf16, #tpu.memory_space<vmem>>, %arg6: memref<1x16xf32, #tpu.memory_space<vmem>>, %arg7: memref<1x8x16x16xf32, #tpu.memory_space<vmem>>, %arg8: memref<248x4xbf16, #tpu.memory_space<vmem>>) attributes {dimension_semantics = [#tpu.dimension_semantics<parallel>, #tpu.dimension_semantics<parallel>], iteration_bounds = array<i64: 2, 2>, scalar_prefetch = 0 : i64, scratch_operands = 1 : i64, tpu.core_type = #tpu.core_type<tc>, window_params = [{transform_indices = @transform_0, window_bounds = array<i64: 1, 8, 16, 4>}, {transform_indices = @transform_1, window_bounds = array<i64: 1, 1, 16, 4>}, {transform_indices = @transform_2, window_bounds = array<i64: 1, 1, 16, 4>}, {pipeline_mode = #tpu.pipeline_mode<synchronous>, transform_indices = @transform_3, window_bounds = array<i64: 36, 16>}, {pipeline_mode = #tpu.pipeline_mode<synchronous>, transform_indices = @transform_4, window_bounds = array<i64: 1, 16>}, {transform_indices = @transform_5, window_bounds = array<i64: 1, 8, 16, 16>}]} {
    %cst = arith.constant 0.000000e+00 : bf16
    %0 = vector.broadcast %cst : bf16 to vector<248x4xbf16>
    %c0 = arith.constant 0 : index
    %c0_0 = arith.constant 0 : index
    %1 = vector.load %arg8[%c0, %c0_0] : memref<248x4xbf16, #tpu.memory_space<vmem>>, vector<248x4xbf16>
    tpu.vector_store %arg8[%c0, %c0_0], %0 {strides = array<i32>} : memref<248x4xbf16, #tpu.memory_space<vmem>>, vector<248x4xbf16>,
    %c0_1 = arith.constant 0 : index
    %c0_2 = arith.constant 0 : index
    %c0_3 = arith.constant 0 : index
    %c0_4 = arith.constant 0 : index
    %2 = vector.load %arg3[%c0_1, %c0_2, %c0_3, %c0_4] : memref<1x1x16x4xf32, #tpu.memory_space<vmem>>, vector<1x1x16x4xf32>
    %3 = vector.shape_cast %2 : vector<1x1x16x4xf32> to vector<16x4xf32>
    %4 = arith.truncf %3 : vector<16x4xf32> to vector<16x4xbf16>
    %c1 = arith.constant 1 : index
    %c0_5 = arith.constant 0 : index
    %5 = vector.load %arg8[%c1, %c0_5] : memref<248x4xbf16, #tpu.memory_space<vmem>>, vector<16x4xbf16>
    tpu.vector_store %arg8[%c1, %c0_5], %4 {strides = array<i32>} : memref<248x4xbf16, #tpu.memory_space<vmem>>, vector<16x4xbf16>,
    %c0_6 = arith.constant 0 : index
    %c0_7 = arith.constant 0 : index
    %c0_8 = arith.constant 0 : index
    %c0_9 = arith.constant 0 : index
    %6 = vector.load %arg2[%c0_6, %c0_7, %c0_8, %c0_9] : memref<1x8x16x4xf32, #tpu.memory_space<vmem>>, vector<1x1x16x4xf32>
    %7 = vector.shape_cast %6 : vector<1x1x16x4xf32> to vector<16x4xf32>
    %8 = arith.truncf %7 : vector<16x4xf32> to vector<16x4xbf16>
    %c25 = arith.constant 25 : index
    %c0_10 = arith.constant 0 : index
    %9 = vector.load %arg8[%c25, %c0_10] : memref<248x4xbf16, #tpu.memory_space<vmem>>, vector<16x4xbf16>
    tpu.vector_store %arg8[%c25, %c0_10], %8 {strides = array<i32>} : memref<248x4xbf16, #tpu.memory_space<vmem>>, vector<16x4xbf16>,
    %c0_11 = arith.constant 0 : index
    %c1_12 = arith.constant 1 : index
    %c0_13 = arith.constant 0 : index
    %c0_14 = arith.constant 0 : index
    %10 = vector.load %arg2[%c0_11, %c1_12, %c0_13, %c0_14] : memref<1x8x16x4xf32, #tpu.memory_space<vmem>>, vector<1x1x16x4xf32>
    %11 = vector.shape_cast %10 : vector<1x1x16x4xf32> to vector<16x4xf32>
    %12 = arith.truncf %11 : vector<16x4xf32> to vector<16x4xbf16>
    %c49 = arith.constant 49 : index
    %c0_15 = arith.constant 0 : index
    %13 = vector.load %arg8[%c49, %c0_15] : memref<248x4xbf16, #tpu.memory_space<vmem>>, vector<16x4xbf16>
    tpu.vector_store %arg8[%c49, %c0_15], %12 {strides = array<i32>} : memref<248x4xbf16, #tpu.memory_space<vmem>>, vector<16x4xbf16>,
    %c0_16 = arith.constant 0 : index
    %c2 = arith.constant 2 : index
    %c0_17 = arith.constant 0 : index
    %c0_18 = arith.constant 0 : index
    %14 = vector.load %arg2[%c0_16, %c2, %c0_17, %c0_18] : memref<1x8x16x4xf32, #tpu.memory_space<vmem>>, vector<1x1x16x4xf32>
    %15 = vector.shape_cast %14 : vector<1x1x16x4xf32> to vector<16x4xf32>
    %16 = arith.truncf %15 : vector<16x4xf32> to vector<16x4xbf16>
    %c73 = arith.constant 73 : index
    %c0_19 = arith.constant 0 : index
    %17 = vector.load %arg8[%c73, %c0_19] : memref<248x4xbf16, #tpu.memory_space<vmem>>, vector<16x4xbf16>
    tpu.vector_store %arg8[%c73, %c0_19], %16 {strides = array<i32>} : memref<248x4xbf16, #tpu.memory_space<vmem>>, vector<16x4xbf16>,
    %c0_20 = arith.constant 0 : index
    %c3 = arith.constant 3 : index
    %c0_21 = arith.constant 0 : index
    %c0_22 = arith.constant 0 : index
    %18 = vector.load %arg2[%c0_20, %c3, %c0_21, %c0_22] : memref<1x8x16x4xf32, #tpu.memory_space<vmem>>, vector<1x1x16x4xf32>
    %19 = vector.shape_cast %18 : vector<1x1x16x4xf32> to vector<16x4xf32>
    %20 = arith.truncf %19 : vector<16x4xf32> to vector<16x4xbf16>
    %c97 = arith.constant 97 : index
    %c0_23 = arith.constant 0 : index
    %21 = vector.load %arg8[%c97, %c0_23] : memref<248x4xbf16, #tpu.memory_space<vmem>>, vector<16x4xbf16>
    tpu.vector_store %arg8[%c97, %c0_23], %20 {strides = array<i32>} : memref<248x4xbf16, #tpu.memory_space<vmem>>, vector<16x4xbf16>,
    %c0_24 = arith.constant 0 : index
    %c4 = arith.constant 4 : index
    %c0_25 = arith.constant 0 : index
    %c0_26 = arith.constant 0 : index
    %22 = vector.load %arg2[%c0_24, %c4, %c0_25, %c0_26] : memref<1x8x16x4xf32, #tpu.memory_space<vmem>>, vector<1x1x16x4xf32>
    %23 = vector.shape_cast %22 : vector<1x1x16x4xf32> to vector<16x4xf32>
    %24 = arith.truncf %23 : vector<16x4xf32> to vector<16x4xbf16>
    %c121 = arith.constant 121 : index
    %c0_27 = arith.constant 0 : index
    %25 = vector.load %arg8[%c121, %c0_27] : memref<248x4xbf16, #tpu.memory_space<vmem>>, vector<16x4xbf16>
    tpu.vector_store %arg8[%c121, %c0_27], %24 {strides = array<i32>} : memref<248x4xbf16, #tpu.memory_space<vmem>>, vector<16x4xbf16>,
    %c0_28 = arith.constant 0 : index
    %c5 = arith.constant 5 : index
    %c0_29 = arith.constant 0 : index
    %c0_30 = arith.constant 0 : index
    %26 = vector.load %arg2[%c0_28, %c5, %c0_29, %c0_30] : memref<1x8x16x4xf32, #tpu.memory_space<vmem>>, vector<1x1x16x4xf32>
    %27 = vector.shape_cast %26 : vector<1x1x16x4xf32> to vector<16x4xf32>
    %28 = arith.truncf %27 : vector<16x4xf32> to vector<16x4xbf16>
    %c145 = arith.constant 145 : index
    %c0_31 = arith.constant 0 : index
    %29 = vector.load %arg8[%c145, %c0_31] : memref<248x4xbf16, #tpu.memory_space<vmem>>, vector<16x4xbf16>
    tpu.vector_store %arg8[%c145, %c0_31], %28 {strides = array<i32>} : memref<248x4xbf16, #tpu.memory_space<vmem>>, vector<16x4xbf16>,
    %c0_32 = arith.constant 0 : index
    %c6 = arith.constant 6 : index
    %c0_33 = arith.constant 0 : index
    %c0_34 = arith.constant 0 : index
    %30 = vector.load %arg2[%c0_32, %c6, %c0_33, %c0_34] : memref<1x8x16x4xf32, #tpu.memory_space<vmem>>, vector<1x1x16x4xf32>
    %31 = vector.shape_cast %30 : vector<1x1x16x4xf32> to vector<16x4xf32>
    %32 = arith.truncf %31 : vector<16x4xf32> to vector<16x4xbf16>
    %c169 = arith.constant 169 : index
    %c0_35 = arith.constant 0 : index
    %33 = vector.load %arg8[%c169, %c0_35] : memref<248x4xbf16, #tpu.memory_space<vmem>>, vector<16x4xbf16>
    tpu.vector_store %arg8[%c169, %c0_35], %32 {strides = array<i32>} : memref<248x4xbf16, #tpu.memory_space<vmem>>, vector<16x4xbf16>,
    %c0_36 = arith.constant 0 : index
    %c7 = arith.constant 7 : index
    %c0_37 = arith.constant 0 : index
    %c0_38 = arith.constant 0 : index
    %34 = vector.load %arg2[%c0_36, %c7, %c0_37, %c0_38] : memref<1x8x16x4xf32, #tpu.memory_space<vmem>>, vector<1x1x16x4xf32>
    %35 = vector.shape_cast %34 : vector<1x1x16x4xf32> to vector<16x4xf32>
    %36 = arith.truncf %35 : vector<16x4xf32> to vector<16x4xbf16>
    %c193 = arith.constant 193 : index
    %c0_39 = arith.constant 0 : index
    %37 = vector.load %arg8[%c193, %c0_39] : memref<248x4xbf16, #tpu.memory_space<vmem>>, vector<16x4xbf16>
    tpu.vector_store %arg8[%c193, %c0_39], %36 {strides = array<i32>} : memref<248x4xbf16, #tpu.memory_space<vmem>>, vector<16x4xbf16>,
    %c0_40 = arith.constant 0 : index
    %c0_41 = arith.constant 0 : index
    %c0_42 = arith.constant 0 : index
    %c0_43 = arith.constant 0 : index
    %38 = vector.load %arg4[%c0_40, %c0_41, %c0_42, %c0_43] : memref<1x1x16x4xf32, #tpu.memory_space<vmem>>, vector<1x1x16x4xf32>
    %39 = vector.shape_cast %38 : vector<1x1x16x4xf32> to vector<16x4xf32>
    %40 = arith.truncf %39 : vector<16x4xf32> to vector<16x4xbf16>
    %c217 = arith.constant 217 : index
    %c0_44 = arith.constant 0 : index
    %41 = vector.load %arg8[%c217, %c0_44] : memref<248x4xbf16, #tpu.memory_space<vmem>>, vector<16x4xbf16>
    tpu.vector_store %arg8[%c217, %c0_44], %40 {strides = array<i32>} : memref<248x4xbf16, #tpu.memory_space<vmem>>, vector<16x4xbf16>,
    %c0_45 = arith.constant 0 : index
    %c0_46 = arith.constant 0 : index
    %42 = vector.load %arg8[%c0_45, %c0_46] : memref<248x4xbf16, #tpu.memory_space<vmem>>, vector<192x4xbf16>
    %c1_47 = arith.constant 1 : index
    %c0_48 = arith.constant 0 : index
    %43 = vector.load %arg8[%c1_47, %c0_48] : memref<248x4xbf16, #tpu.memory_space<vmem>>, vector<192x4xbf16>
    %c2_49 = arith.constant 2 : index
    %c0_50 = arith.constant 0 : index
    %44 = vector.load %arg8[%c2_49, %c0_50] : memref<248x4xbf16, #tpu.memory_space<vmem>>, vector<192x4xbf16>
    %c24 = arith.constant 24 : index
    %c0_51 = arith.constant 0 : index
    %45 = vector.load %arg8[%c24, %c0_51] : memref<248x4xbf16, #tpu.memory_space<vmem>>, vector<192x4xbf16>
    %c25_52 = arith.constant 25 : index
    %c0_53 = arith.constant 0 : index
    %46 = vector.load %arg8[%c25_52, %c0_53] : memref<248x4xbf16, #tpu.memory_space<vmem>>, vector<192x4xbf16>
    %c26 = arith.constant 26 : index
    %c0_54 = arith.constant 0 : index
    %47 = vector.load %arg8[%c26, %c0_54] : memref<248x4xbf16, #tpu.memory_space<vmem>>, vector<192x4xbf16>
    %c48 = arith.constant 48 : index
    %c0_55 = arith.constant 0 : index
    %48 = vector.load %arg8[%c48, %c0_55] : memref<248x4xbf16, #tpu.memory_space<vmem>>, vector<192x4xbf16>
    %c49_56 = arith.constant 49 : index
    %c0_57 = arith.constant 0 : index
    %49 = vector.load %arg8[%c49_56, %c0_57] : memref<248x4xbf16, #tpu.memory_space<vmem>>, vector<192x4xbf16>
    %c50 = arith.constant 50 : index
    %c0_58 = arith.constant 0 : index
    %50 = vector.load %arg8[%c50, %c0_58] : memref<248x4xbf16, #tpu.memory_space<vmem>>, vector<192x4xbf16>
    %51 = tpu.concatenate %42, %43, %44, %45, %46, %47, %48, %49, %50 in 1 : vector<192x4xbf16>, vector<192x4xbf16>, vector<192x4xbf16>, vector<192x4xbf16>, vector<192x4xbf16>, vector<192x4xbf16>, vector<192x4xbf16>, vector<192x4xbf16>, vector<192x4xbf16> -> vector<192x36xbf16>
    %c0_59 = arith.constant 0 : index
    %c0_60 = arith.constant 0 : index
    %52 = vector.load %arg5[%c0_59, %c0_60] : memref<36x16xbf16, #tpu.memory_space<vmem>>, vector<36x16xbf16>
    %cst_61 = arith.constant dense<0.000000e+00> : vector<192x16xf32>
    %53 = tpu.matmul %51, %52, %cst_61 {dimension_numbers = #tpu.dot_dimension_numbers<[1], [0], [0], [1], [0, 0, 1, 1], [], []>} : vector<192x36xbf16>, vector<36x16xbf16>, vector<192x16xf32> -> vector<192x16xf32>
    %c0_62 = arith.constant 0 : index
    %c0_63 = arith.constant 0 : index
    %54 = vector.load %arg6[%c0_62, %c0_63] : memref<1x16xf32, #tpu.memory_space<vmem>>, vector<1x16xf32>
    %55 = vector.broadcast %54 : vector<1x16xf32> to vector<192x16xf32>
    %56 = arith.addf %53, %55 : vector<192x16xf32>
    %cst_64 = arith.constant 0.000000e+00 : f32
    %57 = vector.broadcast %cst_64 : f32 to vector<192x16xf32>
    %58 = arith.cmpf oge, %56, %57 : vector<192x16xf32>
    %cst_65 = arith.constant 2.000000e-01 : f32
    %59 = vector.broadcast %cst_65 : f32 to vector<192x16xf32>
    %60 = arith.mulf %59, %56 : vector<192x16xf32>
    %61 = arith.select %58, %56, %60 : vector<192x16xi1>, vector<192x16xf32>
    %62 = vector.extract_strided_slice %61 {offsets = [0, 0], sizes = [16, 16], strides = [1, 1]} : vector<192x16xf32> to vector<16x16xf32>
    %c0_66 = arith.constant 0 : index
    %c0_67 = arith.constant 0 : index
    %c0_68 = arith.constant 0 : index
    %c0_69 = arith.constant 0 : index
    %63 = vector.load %arg7[%c0_66, %c0_67, %c0_68, %c0_69] : memref<1x8x16x16xf32, #tpu.memory_space<vmem>>, vector<1x1x16x16xf32>
    %64 = vector.shape_cast %63 : vector<1x1x16x16xf32> to vector<16x16xf32>
    %65 = vector.shape_cast %62 : vector<16x16xf32> to vector<1x1x16x16xf32>
    tpu.vector_store %arg7[%c0_66, %c0_67, %c0_68, %c0_69], %65 {strides = array<i32>} : memref<1x8x16x16xf32, #tpu.memory_space<vmem>>, vector<1x1x16x16xf32>,
    %66 = vector.extract_strided_slice %61 {offsets = [24, 0], sizes = [16, 16], strides = [1, 1]} : vector<192x16xf32> to vector<16x16xf32>
    %c0_70 = arith.constant 0 : index
    %c1_71 = arith.constant 1 : index
    %c0_72 = arith.constant 0 : index
    %c0_73 = arith.constant 0 : index
    %67 = vector.load %arg7[%c0_70, %c1_71, %c0_72, %c0_73] : memref<1x8x16x16xf32, #tpu.memory_space<vmem>>, vector<1x1x16x16xf32>
    %68 = vector.shape_cast %67 : vector<1x1x16x16xf32> to vector<16x16xf32>
    %69 = vector.shape_cast %66 : vector<16x16xf32> to vector<1x1x16x16xf32>
    tpu.vector_store %arg7[%c0_70, %c1_71, %c0_72, %c0_73], %69 {strides = array<i32>} : memref<1x8x16x16xf32, #tpu.memory_space<vmem>>, vector<1x1x16x16xf32>,
    %70 = vector.extract_strided_slice %61 {offsets = [48, 0], sizes = [16, 16], strides = [1, 1]} : vector<192x16xf32> to vector<16x16xf32>
    %c0_74 = arith.constant 0 : index
    %c2_75 = arith.constant 2 : index
    %c0_76 = arith.constant 0 : index
    %c0_77 = arith.constant 0 : index
    %71 = vector.load %arg7[%c0_74, %c2_75, %c0_76, %c0_77] : memref<1x8x16x16xf32, #tpu.memory_space<vmem>>, vector<1x1x16x16xf32>
    %72 = vector.shape_cast %71 : vector<1x1x16x16xf32> to vector<16x16xf32>
    %73 = vector.shape_cast %70 : vector<16x16xf32> to vector<1x1x16x16xf32>
    tpu.vector_store %arg7[%c0_74, %c2_75, %c0_76, %c0_77], %73 {strides = array<i32>} : memref<1x8x16x16xf32, #tpu.memory_space<vmem>>, vector<1x1x16x16xf32>,
    %74 = vector.extract_strided_slice %61 {offsets = [72, 0], sizes = [16, 16], strides = [1, 1]} : vector<192x16xf32> to vector<16x16xf32>
    %c0_78 = arith.constant 0 : index
    %c3_79 = arith.constant 3 : index
    %c0_80 = arith.constant 0 : index
    %c0_81 = arith.constant 0 : index
    %75 = vector.load %arg7[%c0_78, %c3_79, %c0_80, %c0_81] : memref<1x8x16x16xf32, #tpu.memory_space<vmem>>, vector<1x1x16x16xf32>
    %76 = vector.shape_cast %75 : vector<1x1x16x16xf32> to vector<16x16xf32>
    %77 = vector.shape_cast %74 : vector<16x16xf32> to vector<1x1x16x16xf32>
    tpu.vector_store %arg7[%c0_78, %c3_79, %c0_80, %c0_81], %77 {strides = array<i32>} : memref<1x8x16x16xf32, #tpu.memory_space<vmem>>, vector<1x1x16x16xf32>,
    %78 = vector.extract_strided_slice %61 {offsets = [96, 0], sizes = [16, 16], strides = [1, 1]} : vector<192x16xf32> to vector<16x16xf32>
    %c0_82 = arith.constant 0 : index
    %c4_83 = arith.constant 4 : index
    %c0_84 = arith.constant 0 : index
    %c0_85 = arith.constant 0 : index
    %79 = vector.load %arg7[%c0_82, %c4_83, %c0_84, %c0_85] : memref<1x8x16x16xf32, #tpu.memory_space<vmem>>, vector<1x1x16x16xf32>
    %80 = vector.shape_cast %79 : vector<1x1x16x16xf32> to vector<16x16xf32>
    %81 = vector.shape_cast %78 : vector<16x16xf32> to vector<1x1x16x16xf32>
    tpu.vector_store %arg7[%c0_82, %c4_83, %c0_84, %c0_85], %81 {strides = array<i32>} : memref<1x8x16x16xf32, #tpu.memory_space<vmem>>, vector<1x1x16x16xf32>,
    %82 = vector.extract_strided_slice %61 {offsets = [120, 0], sizes = [16, 16], strides = [1, 1]} : vector<192x16xf32> to vector<16x16xf32>
    %c0_86 = arith.constant 0 : index
    %c5_87 = arith.constant 5 : index
    %c0_88 = arith.constant 0 : index
    %c0_89 = arith.constant 0 : index
    %83 = vector.load %arg7[%c0_86, %c5_87, %c0_88, %c0_89] : memref<1x8x16x16xf32, #tpu.memory_space<vmem>>, vector<1x1x16x16xf32>
    %84 = vector.shape_cast %83 : vector<1x1x16x16xf32> to vector<16x16xf32>
    %85 = vector.shape_cast %82 : vector<16x16xf32> to vector<1x1x16x16xf32>
    tpu.vector_store %arg7[%c0_86, %c5_87, %c0_88, %c0_89], %85 {strides = array<i32>} : memref<1x8x16x16xf32, #tpu.memory_space<vmem>>, vector<1x1x16x16xf32>,
    %86 = vector.extract_strided_slice %61 {offsets = [144, 0], sizes = [16, 16], strides = [1, 1]} : vector<192x16xf32> to vector<16x16xf32>
    %c0_90 = arith.constant 0 : index
    %c6_91 = arith.constant 6 : index
    %c0_92 = arith.constant 0 : index
    %c0_93 = arith.constant 0 : index
    %87 = vector.load %arg7[%c0_90, %c6_91, %c0_92, %c0_93] : memref<1x8x16x16xf32, #tpu.memory_space<vmem>>, vector<1x1x16x16xf32>
    %88 = vector.shape_cast %87 : vector<1x1x16x16xf32> to vector<16x16xf32>
    %89 = vector.shape_cast %86 : vector<16x16xf32> to vector<1x1x16x16xf32>
    tpu.vector_store %arg7[%c0_90, %c6_91, %c0_92, %c0_93], %89 {strides = array<i32>} : memref<1x8x16x16xf32, #tpu.memory_space<vmem>>, vector<1x1x16x16xf32>,
    %90 = vector.extract_strided_slice %61 {offsets = [168, 0], sizes = [16, 16], strides = [1, 1]} : vector<192x16xf32> to vector<16x16xf32>
    %c0_94 = arith.constant 0 : index
    %c7_95 = arith.constant 7 : index
    %c0_96 = arith.constant 0 : index
    %c0_97 = arith.constant 0 : index
    %91 = vector.load %arg7[%c0_94, %c7_95, %c0_96, %c0_97] : memref<1x8x16x16xf32, #tpu.memory_space<vmem>>, vector<1x1x16x16xf32>
    %92 = vector.shape_cast %91 : vector<1x1x16x16xf32> to vector<16x16xf32>
    %93 = vector.shape_cast %90 : vector<16x16xf32> to vector<1x1x16x16xf32>
    tpu.vector_store %arg7[%c0_94, %c7_95, %c0_96, %c0_97], %93 {strides = array<i32>} : memref<1x8x16x16xf32, #tpu.memory_space<vmem>>, vector<1x1x16x16xf32>,
    return
  }
  func.func @transform_0(%arg0: i32, %arg1: i32) -> (i32, i32, i32, i32) {
    %c0_i32 = arith.constant 0 : i32
    %c0_i32_0 = arith.constant 0 : i32
    %c0_i32_1 = arith.constant 0 : i32
    return %arg0, %arg1, %c0_i32, %c0_i32_0 : i32, i32, i32, i32
  }
  func.func @transform_1(%arg0: i32, %arg1: i32) -> (i32, i32, i32, i32) {
    %c0_i32 = arith.constant 0 : i32
    %c0_i32_0 = arith.constant 0 : i32
    %c0_i32_1 = arith.constant 0 : i32
    return %arg0, %arg1, %c0_i32, %c0_i32_0 : i32, i32, i32, i32
  }
  func.func @transform_2(%arg0: i32, %arg1: i32) -> (i32, i32, i32, i32) {
    %c0_i32 = arith.constant 0 : i32
    %c0_i32_0 = arith.constant 0 : i32
    %c0_i32_1 = arith.constant 0 : i32
    return %arg0, %arg1, %c0_i32, %c0_i32_0 : i32, i32, i32, i32
  }
  func.func @transform_3(%arg0: i32, %arg1: i32) -> (i32, i32) {
    %c0_i32 = arith.constant 0 : i32
    %c0_i32_0 = arith.constant 0 : i32
    %c0_i32_1 = arith.constant 0 : i32
    return %c0_i32, %c0_i32_0 : i32, i32
  }
  func.func @transform_4(%arg0: i32, %arg1: i32) -> (i32, i32) {
    %c0_i32 = arith.constant 0 : i32
    %c0_i32_0 = arith.constant 0 : i32
    %c0_i32_1 = arith.constant 0 : i32
    return %c0_i32, %c0_i32_0 : i32, i32
  }
  func.func @transform_5(%arg0: i32, %arg1: i32) -> (i32, i32, i32, i32) {
    %c0_i32 = arith.constant 0 : i32
    %c0_i32_0 = arith.constant 0 : i32
    %c0_i32_1 = arith.constant 0 : i32
    return %arg0, %arg1, %c0_i32, %c0_i32_0 : i32, i32, i32, i32
  }
}

</mosaic_0001>

<llo_original>
// kernel: conv_block.1
$region0: #{conv_block.1}
  #allocation0 [shape = 'u32[]', space=smem, size = 0x4, offset = 0x4, fixed_abs, tag = 'smem constant byte address 0x4 - core index']
  #allocation1 [shape = 'u32[72,128]{1,0:T(1,128)}', space=vmem, size = 0x9000, scoped, tag = 'internal scratch']
  #allocation2 [shape = 'bf16[248,4]{1,0:T(8,128)(2,1)}', space=vmem, size = 0xf800, scoped, tag = 'scratch operand']
  %s0 = inlined_call_operand.vmem [shape: f32[2,16,16,4], index: 0, kind: input, shape index: {}]
  %s1 = inlined_call_operand.vmem [shape: f32[2,2,16,4], index: 1, kind: input, shape index: {}]
  %s2 = inlined_call_operand.vmem [shape: f32[2,2,16,4], index: 2, kind: input, shape index: {}]
  %s3 = inlined_call_operand.vmem [shape: bf16[36,16], index: 3, kind: input, shape index: {}]
  %s4 = inlined_call_operand.vmem [shape: f32[1,16], index: 4, kind: input, shape index: {}]
  %s5 = inlined_call_operand.vmem [shape: f32[2,16,16,16], index: 5, kind: output, shape index: {}]
  %s6 = sld [smem:[#allocation0]]
  $region53: #{conv_block.1} parent=0
    _
  %s8 = ssub.s32 1, %s6
  %s9 = scalar_select 0, %s8, %s6
  loop: start=0, step=1, limit=6
  $region2: #{conv_block.1} parent=0 // loop_pre_header
    _
  $region3: #{conv_block.1} parent=0 // loop_header
    %s11 = sphi 0, %s15
    %p12 = scmp.ge.s32.totalorder %s11, 6
    %s18 = sphi 0, %s30
    %s19 = sphi 0, %s26
    %s20 = sphi 0, %s18
    %s21 = sphi 0, %s19
    %s22 = sphi 0, %s20
    %s23 = sphi 0, %s21
    %s35 = sphi 0, %s37
    %s38 = sphi 0, %s35
    %s39 = sphi 0, %s38
    %s55 = sphi 0, %s39
    %s63 = sphi 0, %s65
    %s66 = sphi 0, %s63
    %s67 = sphi 0, %s66
    %s83 = sphi 0, %s67
    %s91 = sphi 0, %s93
    %s94 = sphi 0, %s91
    %s95 = sphi 0, %s94
    %s111 = sphi 0, %s95
    %s115 = sphi 0, %s115
    %s117 = sphi 0, %s115
    %s118 = sphi 0, %s117
    %s132 = sphi 0, %s118
    %s136 = sphi 0, %s136
    %s138 = sphi 0, %s136
    %s139 = sphi 0, %s138
    %s153 = sphi 0, %s139
    %s161 = sphi 0, %s163
    %s164 = sphi 0, %s161
    %s165 = sphi 0, %s164
    %s181 = sphi 0, %s165
  $region4: #{conv_block.1} parent=0 // loop_header_branch
    %14 = sbr.rel (%p12) target = $region8
  $region5: #{conv_block.1} parent=0 // loop_body
    %s16 = ssub.s32 %s11, 1
    %s17 = ssub.s32 %s11, 2
    %s24 = sadd.s32 1, %s19
    %p25 = scmp.ge.s32.totalorder %s24, 2
    %s26 = scalar_select %p25, 0, %s24
    %s27 = sadd.s32 1, %s18
    %s28 = scalar_select %p25, %s27, %s18
    %p29 = scmp.ge.s32.totalorder %s28, 2
    %s30 = scalar_select %p29, 0, %s28
    %s31 = ssub.s32 %s18, %s30
    %s32 = ssub.s32 %s19, %s26
    %s33 = sor.u32 %s31, %s32
    %p34 = scmp.eq.s32.totalorder %s33, 0
    %s36 = sadd.s32 %s35, 1
    %s37 = scalar_select %p34, %s35, %s36
    %p40 = pneg %p34
    %p41 = scmp.eq.s32.totalorder %s11, 3
    %p42 = por %p40, %p41
    %p43 = scmp.ne.s32.totalorder %s35, %s38
    %p44 = scmp.eq.s32.totalorder %s11, 0
    %p45 = por %p43, %p44
    %p46 = scmp.ne.s32.totalorder %s35, %s38
    %p47 = scmp.eq.s32.totalorder %s16, 3
    %p48 = por %p46, %p47
    %p49 = scmp.ne.s32.totalorder %s38, %s39
    %p50 = scmp.eq.s32.totalorder %s16, 0
    %p51 = por %p49, %p50
    %p52 = scmp.ne.s32.totalorder %s38, %s39
    %p53 = scmp.eq.s32.totalorder %s17, 3
    %p54 = por %p52, %p53
    %p56 = scmp.ne.s32.totalorder %s39, %s55
    %p57 = scmp.eq.s32.totalorder %s17, 0
    %p58 = por %p56, %p57
    %s59 = ssub.s32 %s18, %s30
    %s60 = ssub.s32 %s19, %s26
    %s61 = sor.u32 %s59, %s60
    %p62 = scmp.eq.s32.totalorder %s61, 0
    %s64 = sadd.s32 %s63, 1
    %s65 = scalar_select %p62, %s63, %s64
    %p68 = pneg %p62
    %p69 = scmp.eq.s32.totalorder %s11, 3
    %p70 = por %p68, %p69
    %p71 = scmp.ne.s32.totalorder %s63, %s66
    %p72 = scmp.eq.s32.totalorder %s11, 0
    %p73 = por %p71, %p72
    %p74 = scmp.ne.s32.totalorder %s63, %s66
    %p75 = scmp.eq.s32.totalorder %s16, 3
    %p76 = por %p74, %p75
    %p77 = scmp.ne.s32.totalorder %s66, %s67
    %p78 = scmp.eq.s32.totalorder %s16, 0
    %p79 = por %p77, %p78
    %p80 = scmp.ne.s32.totalorder %s66, %s67
    %p81 = scmp.eq.s32.totalorder %s17, 3
    %p82 = por %p80, %p81
    %p84 = scmp.ne.s32.totalorder %s67, %s83
    %p85 = scmp.eq.s32.totalorder %s17, 0
    %p86 = por %p84, %p85
    %s87 = ssub.s32 %s18, %s30
    %s88 = ssub.s32 %s19, %s26
    %s89 = sor.u32 %s87, %s88
    %p90 = scmp.eq.s32.totalorder %s89, 0
    %s92 = sadd.s32 %s91, 1
    %s93 = scalar_select %p90, %s91, %s92
    %p96 = pneg %p90
    %p97 = scmp.eq.s32.totalorder %s11, 3
    %p98 = por %p96, %p97
    %p99 = scmp.ne.s32.totalorder %s91, %s94
    %p100 = scmp.eq.s32.totalorder %s11, 0
    %p101 = por %p99, %p100
    %p102 = scmp.ne.s32.totalorder %s91, %s94
    %p103 = scmp.eq.s32.totalorder %s16, 3
    %p104 = por %p102, %p103
    %p105 = scmp.ne.s32.totalorder %s94, %s95
    %p106 = scmp.eq.s32.totalorder %s16, 0
    %p107 = por %p105, %p106
    %p108 = scmp.ne.s32.totalorder %s94, %s95
    %p109 = scmp.eq.s32.totalorder %s17, 3
    %p110 = por %p108, %p109
    %p112 = scmp.ne.s32.totalorder %s95, %s111
    %p113 = scmp.eq.s32.totalorder %s17, 0
    %p114 = por %p112, %p113
    %s116 = sadd.s32 %s115, 1
    %p119 = scmp.eq.s32.totalorder %s11, 3
    %p120 = scmp.ne.s32.totalorder %s115, %s117
    %p121 = scmp.eq.s32.totalorder %s11, 0
    %p122 = por %p120, %p121
    %p123 = scmp.ne.s32.totalorder %s115, %s117
    %p124 = scmp.eq.s32.totalorder %s16, 3
    %p125 = por %p123, %p124
    %p126 = scmp.ne.s32.totalorder %s117, %s118
    %p127 = scmp.eq.s32.totalorder %s16, 0
    %p128 = por %p126, %p127
    %p129 = scmp.ne.s32.totalorder %s117, %s118
    %p130 = scmp.eq.s32.totalorder %s17, 3
    %p131 = por %p129, %p130
    %p133 = scmp.ne.s32.totalorder %s118, %s132
    %p134 = scmp.eq.s32.totalorder %s17, 0
    %p135 = por %p133, %p134
    %s137 = sadd.s32 %s136, 1
    %p140 = scmp.eq.s32.totalorder %s11, 3
    %p141 = scmp.ne.s32.totalorder %s136, %s138
    %p142 = scmp.eq.s32.totalorder %s11, 0
    %p143 = por %p141, %p142
    %p144 = scmp.ne.s32.totalorder %s136, %s138
    %p145 = scmp.eq.s32.totalorder %s16, 3
    %p146 = por %p144, %p145
    %p147 = scmp.ne.s32.totalorder %s138, %s139
    %p148 = scmp.eq.s32.totalorder %s16, 0
    %p149 = por %p147, %p148
    %p150 = scmp.ne.s32.totalorder %s138, %s139
    %p151 = scmp.eq.s32.totalorder %s17, 3
    %p152 = por %p150, %p151
    %p154 = scmp.ne.s32.totalorder %s139, %s153
    %p155 = scmp.eq.s32.totalorder %s17, 0
    %p156 = por %p154, %p155
    %s157 = ssub.s32 %s18, %s30
    %s158 = ssub.s32 %s19, %s26
    %s159 = sor.u32 %s157, %s158
    %p160 = scmp.eq.s32.totalorder %s159, 0
    %s162 = sadd.s32 %s161, 1
    %s163 = scalar_select %p160, %s161, %s162
    %p166 = pneg %p160
    %p167 = scmp.eq.s32.totalorder %s11, 3
    %p168 = por %p166, %p167
    %p169 = scmp.ne.s32.totalorder %s161, %s164
    %p170 = scmp.eq.s32.totalorder %s11, 0
    %p171 = por %p169, %p170
    %p172 = scmp.ne.s32.totalorder %s161, %s164
    %p173 = scmp.eq.s32.totalorder %s16, 3
    %p174 = por %p172, %p173
    %p175 = scmp.ne.s32.totalorder %s164, %s165
    %p176 = scmp.eq.s32.totalorder %s16, 0
    %p177 = por %p175, %p176
    %p178 = scmp.ne.s32.totalorder %s164, %s165
    %p179 = scmp.eq.s32.totalorder %s17, 3
    %p180 = por %p178, %p179
    %p182 = scmp.ne.s32.totalorder %s165, %s181
    %p183 = scmp.eq.s32.totalorder %s17, 0
    %p184 = por %p182, %p183
    %p185 = scmp.le.s32.totalorder 1, %s11
    %p186 = scmp.lt.s32.totalorder %s11, 5
    %p187 = pnand %p185, %p186
    %p188 = pneg %p187
    // Predicated region
    $region9: #{conv_block.1} parent=5 // pred_check
      _
    $region10: #{conv_block.1} parent=5 // pred_check_branch
      %190 = sbr.rel (%p187) target = $region12
    $region11: #{conv_block.1} parent=5 // pred_region
      %s191 = ssub.s32 %s11, 1
      // Predicated region
      $region13: #{conv_block.1} parent=11 // pred_check
        %p192 = pneg %p128
      $region14: #{conv_block.1} parent=11 // pred_check_branch
        %194 = sbr.rel (%p192) target = $region16
      $region15: #{conv_block.1} parent=11 // pred_region
        _
      $region16: #{conv_block.1} parent=11 // pred_fallthru
        _
      // Predicated region
      $region17: #{conv_block.1} parent=11 // pred_check
        %p195 = pneg %p149
      $region18: #{conv_block.1} parent=11 // pred_check_branch
        %197 = sbr.rel (%p195) target = $region20
      $region19: #{conv_block.1} parent=11 // pred_region
        _
      $region20: #{conv_block.1} parent=11 // pred_fallthru
        _
    $region12: #{conv_block.1} parent=5 // pred_fallthru
      _
    %p198 = scmp.lt.s32.totalorder %s11, 4
    // Predicated region
    $region21: #{conv_block.1} parent=5 // pred_check
      %p199 = pneg %p198
    $region22: #{conv_block.1} parent=5 // pred_check_branch
      %201 = sbr.rel (%p199) target = $region24
    $region23: #{conv_block.1} parent=5 // pred_region
      // Predicated region
      $region25: #{conv_block.1} parent=23 // pred_check
        %p202 = pneg %p45
      $region26: #{conv_block.1} parent=23 // pred_check_branch
        %204 = sbr.rel (%p202) target = $region28
      $region27: #{conv_block.1} parent=23 // pred_region
        %s205 = smul.u32 8, %s19
        %p206 = scmp.lt.s32.totalorder %s18, 1
        %s207 = scalar_select %p206, %s18, 1
        %p208 = scmp.lt.s32.totalorder %s205, 15
        %s209 = scalar_select %p208, %s205, 15
        %s210 = smul.addr %s209, 2
        %s211 = smul.addr %s207, 32
        %s212 = sadd.s32 %s210, %s211
        %s213 = smul.addr %s212, 8
        %s214 = scalar_lea.vmem %s0, %s213
        %s215 = smul.u32 8, %s19
      $region28: #{conv_block.1} parent=23 // pred_fallthru
        _
      // Predicated region
      $region29: #{conv_block.1} parent=23 // pred_check
        %p216 = pneg %p73
      $region30: #{conv_block.1} parent=23 // pred_check_branch
        %218 = sbr.rel (%p216) target = $region32
      $region31: #{conv_block.1} parent=23 // pred_region
        %p219 = scmp.lt.s32.totalorder %s18, 1
        %s220 = scalar_select %p219, %s18, 1
        %p221 = scmp.lt.s32.totalorder %s19, 1
        %s222 = scalar_select %p221, %s19, 1
        %s223 = smul.addr %s222, 2
        %s224 = smul.addr %s220, 4
        %s225 = sadd.s32 %s223, %s224
        %s226 = smul.addr %s225, 8
        %s227 = scalar_lea.vmem %s1, %s226
      $region32: #{conv_block.1} parent=23 // pred_fallthru
        _
      // Predicated region
      $region33: #{conv_block.1} parent=23 // pred_check
        %p228 = pneg %p101
      $region34: #{conv_block.1} parent=23 // pred_check_branch
        %230 = sbr.rel (%p228) target = $region36
      $region35: #{conv_block.1} parent=23 // pred_region
        %p231 = scmp.lt.s32.totalorder %s18, 1
        %s232 = scalar_select %p231, %s18, 1
        %p233 = scmp.lt.s32.totalorder %s19, 1
        %s234 = scalar_select %p233, %s19, 1
        %s235 = smul.addr %s234, 2
        %s236 = smul.addr %s232, 4
        %s237 = sadd.s32 %s235, %s236
        %s238 = smul.addr %s237, 8
        %s239 = scalar_lea.vmem %s2, %s238
      $region36: #{conv_block.1} parent=23 // pred_fallthru
        _
    $region24: #{conv_block.1} parent=5 // pred_fallthru
      _
    %p240 = scmp.le.s32.totalorder 1, %s11
    %p241 = scmp.lt.s32.totalorder %s11, 5
    %p242 = pnand %p240, %p241
    %p243 = pneg %p242
    // Predicated region
    $region37: #{conv_block.1} parent=5 // pred_check
      _
    $region38: #{conv_block.1} parent=5 // pred_check_branch
      %245 = sbr.rel (%p242) target = $region40
    $region39: #{conv_block.1} parent=5 // pred_region
      %s246 = ssub.s32 %s11, 1
      %s247 = smul.u32 8, %s21
      %p248 = scmp.lt.s32.totalorder %s20, 1
      %s249 = scalar_select %p248, %s20, 1
      %p250 = scmp.lt.s32.totalorder %s247, 15
      %s251 = scalar_select %p250, %s247, 15
      %s252 = smul.addr %s251, 2
      %s253 = smul.addr %s249, 32
      %s254 = sadd.s32 %s252, %s253
      %s255 = smul.addr %s254, 8
      %s256 = scalar_lea.vmem %s0, %s255
      %p257 = pneg %p51
      %p258 = pneg %p48
      %p259 = scmp.lt.s32.totalorder %s20, 1
      %s260 = scalar_select %p259, %s20, 1
      %p261 = scmp.lt.s32.totalorder %s21, 1
      %s262 = scalar_select %p261, %s21, 1
      %s263 = smul.addr %s262, 2
      %s264 = smul.addr %s260, 4
      %s265 = sadd.s32 %s263, %s264
      %s266 = smul.addr %s265, 8
      %s267 = scalar_lea.vmem %s1, %s266
      %p268 = pneg %p79
      %p269 = pneg %p76
      %p270 = scmp.lt.s32.totalorder %s20, 1
      %s271 = scalar_select %p270, %s20, 1
      %p272 = scmp.lt.s32.totalorder %s21, 1
      %s273 = scalar_select %p272, %s21, 1
      %s274 = smul.addr %s273, 2
      %s275 = smul.addr %s271, 4
      %s276 = sadd.s32 %s274, %s275
      %s277 = smul.addr %s276, 8
      %s278 = scalar_lea.vmem %s2, %s277
      %p279 = pneg %p107
      %p280 = pneg %p104
      %p281 = pneg %p128
      %p282 = pneg %p125
      %p283 = pneg %p149
      %p284 = pneg %p146
      %p285 = pneg %p177
      %p286 = pneg %p174
      %s287 = smul.u32 8, %s21
      %p288 = scmp.lt.s32.totalorder %s20, 1
      %s289 = scalar_select %p288, %s20, 1
      %p290 = scmp.lt.s32.totalorder %s287, 15
      %s291 = scalar_select %p290, %s287, 15
      %s292 = smul.addr %s291, 2
      %s293 = smul.addr %s289, 32
      %s294 = sadd.s32 %s292, %s293
      %s295 = smul.addr %s294, 8
      %s296 = scalar_lea.vmem %s5, %s295
      %s297 = smul.u32 8, %s21
      %p298 = scmp.lt.s32.totalorder %s20, 1
      %s299 = scalar_select %p298, %s20, 1
      %p300 = scmp.lt.s32.totalorder %s297, 15
      %s301 = scalar_select %p300, %s297, 15
      %s302 = smul.addr %s301, 2
      %s303 = smul.addr %s299, 32
      %s304 = sadd.s32 %s302, %s303
      %s305 = smul.addr %s304, 8
      %s306 = scalar_lea.vmem %s0, %s305
      %s307 = smul.u32 8, %s21
      %p308 = scmp.lt.s32.totalorder %s20, 1
      %s309 = scalar_select %p308, %s20, 1
      %p310 = scmp.lt.s32.totalorder %s21, 1
      %s311 = scalar_select %p310, %s21, 1
      %s312 = smul.addr %s311, 2
      %s313 = smul.addr %s309, 4
      %s314 = sadd.s32 %s312, %s313
      %s315 = smul.addr %s314, 8
      %s316 = scalar_lea.vmem %s1, %s315
      %p317 = scmp.lt.s32.totalorder %s20, 1
      %s318 = scalar_select %p317, %s20, 1
      %p319 = scmp.lt.s32.totalorder %s21, 1
      %s320 = scalar_select %p319, %s21, 1
      %s321 = smul.addr %s320, 2
      %s322 = smul.addr %s318, 4
      %s323 = sadd.s32 %s321, %s322
      %s324 = smul.addr %s323, 8
      %s325 = scalar_lea.vmem %s2, %s324
      %s326 = smul.u32 8, %s21
      %p327 = scmp.lt.s32.totalorder %s20, 1
      %s328 = scalar_select %p327, %s20, 1
      %p329 = scmp.lt.s32.totalorder %s326, 15
      %s330 = scalar_select %p329, %s326, 15
      %s331 = smul.addr %s330, 2
      %s332 = smul.addr %s328, 32
      %s333 = sadd.s32 %s331, %s332
      %s334 = smul.addr %s333, 8
      %s335 = scalar_lea.vmem %s5, %s334
      %s336 = smul.u32 8, %s21
      %vm338 = vcmask 27648
      %339 = vst.msk [vmem:[#allocation2] sm:$0xf] %vm338, 0
      %340 = vst.msk [vmem:[#allocation2 + $0x4] sm:$0xf] %vm338, 0
      %341 = vst.msk [vmem:[#allocation2 + $0x8] sm:$0xf] %vm338, 0
      %342 = vst.msk [vmem:[#allocation2 + $0xc] sm:$0xf] %vm338, 0
      %343 = vst.msk [vmem:[#allocation2 + $0x10] sm:$0xf] %vm338, 0
      %344 = vst.msk [vmem:[#allocation2 + $0x14] sm:$0xf] %vm338, 0
      %345 = vst.msk [vmem:[#allocation2 + $0x18] sm:$0xf] %vm338, 0
      %346 = vst.msk [vmem:[#allocation2 + $0x1c] sm:$0xf] %vm338, 0
      %347 = vst.msk [vmem:[#allocation2 + $0x20] sm:$0xf] %vm338, 0
      %348 = vst.msk [vmem:[#allocation2 + $0x24] sm:$0xf] %vm338, 0
      %349 = vst.msk [vmem:[#allocation2 + $0x28] sm:$0xf] %vm338, 0
      %350 = vst.msk [vmem:[#allocation2 + $0x2c] sm:$0xf] %vm338, 0
      %351 = vst.msk [vmem:[#allocation2 + $0x30] sm:$0xf] %vm338, 0
      %352 = vst.msk [vmem:[#allocation2 + $0x34] sm:$0xf] %vm338, 0
      %353 = vst.msk [vmem:[#allocation2 + $0x38] sm:$0xf] %vm338, 0
      %354 = vst.msk [vmem:[#allocation2 + $0x3c] sm:$0xf] %vm338, 0
      %355 = vst.msk [vmem:[#allocation2 + $0x40] sm:$0xf] %vm338, 0
      %356 = vst.msk [vmem:[#allocation2 + $0x44] sm:$0xf] %vm338, 0
      %357 = vst.msk [vmem:[#allocation2 + $0x48] sm:$0xf] %vm338, 0
      %358 = vst.msk [vmem:[#allocation2 + $0x4c] sm:$0xf] %vm338, 0
      %359 = vst.msk [vmem:[#allocation2 + $0x50] sm:$0xf] %vm338, 0
      %360 = vst.msk [vmem:[#allocation2 + $0x54] sm:$0xf] %vm338, 0
      %361 = vst.msk [vmem:[#allocation2 + $0x58] sm:$0xf] %vm338, 0
      %362 = vst.msk [vmem:[#allocation2 + $0x5c] sm:$0xf] %vm338, 0
      %363 = vst.msk [vmem:[#allocation2 + $0x60] sm:$0xf] %vm338, 0
      %364 = vst.msk [vmem:[#allocation2 + $0x64] sm:$0xf] %vm338, 0
      %365 = vst.msk [vmem:[#allocation2 + $0x68] sm:$0xf] %vm338, 0
      %366 = vst.msk [vmem:[#allocation2 + $0x6c] sm:$0xf] %vm338, 0
      %367 = vst.msk [vmem:[#allocation2 + $0x70] sm:$0xf] %vm338, 0
      %368 = vst.msk [vmem:[#allocation2 + $0x74] sm:$0xf] %vm338, 0
      %369 = vst.msk [vmem:[#allocation2 + $0x78] sm:$0xf] %vm338, 0
      %v370 = vld [vmem:[%s316] sm:$0xff]
      %v371 = vld [vmem:[%s316 + $0x8] sm:$0xff]
      %v372 = vpack.c.bf16 %v370, %v370
      %v373 = vpack.c.bf16 %v371, %v371
      %vm374 = vsmask.f32 256
      %vm375 = vsmask.f32 4368
      %vm376 = vmor %vm374, %vm375
      %v378 = vshrl.u32 %v372, 16
      %v380 = vrot.slane %v378, 7
      %v381 = vshll.u32 %v372, 16
      %v383 = vor.u32 %v380, %v381
      %v384 = vrot.slane %v380, 4
      %v386 = vshrl.u32 %v373, 16
      %v388 = vrot.slane %v386, 7
      %v389 = vshll.u32 %v373, 16
      %v391 = vor.u32 %v388, %v389
      %v392 = vsel %vm376, %v384, %v391
      %v393 = vrot.slane %v388, 4
      %vm397 = vcmask 27648
      %vm398 = vsmask.f32 7938
      %vm399 = vmand %vm397, %vm398
      %v400 = vld [vmem:[#allocation2] sm:$0xf]
      %v401 = vsel %vm399, %v383, %v400
      %402 = vst [vmem:[#allocation2] sm:$0xf] %v401
      %403 = vst.msk [vmem:[#allocation2 + $0x4] sm:$0xf] %vm338, %v392
      %vm404 = vcmask 24576
      %vm405 = vmand %vm404, %vm374
      %v406 = vld [vmem:[#allocation2 + $0x8] sm:$0x1]
      %v407 = vsel %vm405, %v393, %v406
      %408 = vst [vmem:[#allocation2 + $0x8] sm:$0x1] %v407
      %v409 = vld [vmem:[%s306] sm:$0xff]
      %v410 = vld [vmem:[%s306 + $0x8] sm:$0xff]
      %v411 = vpack.c.bf16 %v409, %v409
      %v412 = vpack.c.bf16 %v410, %v410
      %v414 = vshrl.u32 %v411, 16
      %v416 = vrot.slane %v414, 7
      %v417 = vshll.u32 %v411, 16
      %v419 = vor.u32 %v416, %v417
      %v420 = vrot.slane %v416, 4
      %v422 = vshrl.u32 %v412, 16
      %v424 = vrot.slane %v422, 7
      %v425 = vshll.u32 %v412, 16
      %v427 = vor.u32 %v424, %v425
      %v428 = vsel %vm376, %v420, %v427
      %v429 = vrot.slane %v424, 4
      %v433 = vld [vmem:[#allocation2 + $0xc] sm:$0xf]
      %v434 = vsel %vm399, %v419, %v433
      %435 = vst [vmem:[#allocation2 + $0xc] sm:$0xf] %v434
      %436 = vst.msk [vmem:[#allocation2 + $0x10] sm:$0xf] %vm338, %v428
      %v437 = vld [vmem:[#allocation2 + $0x14] sm:$0x1]
      %v438 = vsel %vm405, %v429, %v437
      %439 = vst [vmem:[#allocation2 + $0x14] sm:$0x1] %v438
      %s440 = scalar_lea.vmem %s306, 16
      %v441 = vld [vmem:[%s440] sm:$0xff]
      %v442 = vld [vmem:[%s440 + $0x8] sm:$0xff]
      %v443 = vpack.c.bf16 %v441, %v441
      %v444 = vpack.c.bf16 %v442, %v442
      %v446 = vshrl.u32 %v443, 16
      %v448 = vrot.slane %v446, 7
      %v449 = vshll.u32 %v443, 16
      %v451 = vor.u32 %v448, %v449
      %v452 = vrot.slane %v448, 4
      %v454 = vshrl.u32 %v444, 16
      %v456 = vrot.slane %v454, 7
      %v457 = vshll.u32 %v444, 16
      %v459 = vor.u32 %v456, %v457
      %v460 = vsel %vm376, %v452, %v459
      %v461 = vrot.slane %v456, 4
      %v465 = vld [vmem:[#allocation2 + $0x18] sm:$0xf]
      %v466 = vsel %vm399, %v451, %v465
      %467 = vst [vmem:[#allocation2 + $0x18] sm:$0xf] %v466
      %468 = vst.msk [vmem:[#allocation2 + $0x1c] sm:$0xf] %vm338, %v460
      %v469 = vld [vmem:[#allocation2 + $0x20] sm:$0x1]
      %v470 = vsel %vm405, %v461, %v469
      %471 = vst [vmem:[#allocation2 + $0x20] sm:$0x1] %v470
      %s472 = scalar_lea.vmem %s306, 32
      %v473 = vld [vmem:[%s472] sm:$0xff]
      %v474 = vld [vmem:[%s472 + $0x8] sm:$0xff]
      %v475 = vpack.c.bf16 %v473, %v473
      %v476 = vpack.c.bf16 %v474, %v474
      %v478 = vshrl.u32 %v475, 16
      %v480 = vrot.slane %v478, 7
      %v481 = vshll.u32 %v475, 16
      %v483 = vor.u32 %v480, %v481
      %v484 = vrot.slane %v480, 4
      %v486 = vshrl.u32 %v476, 16
      %v488 = vrot.slane %v486, 7
      %v489 = vshll.u32 %v476, 16
      %v491 = vor.u32 %v488, %v489
      %v492 = vsel %vm376, %v484, %v491
      %v493 = vrot.slane %v488, 4
      %v497 = vld [vmem:[#allocation2 + $0x24] sm:$0xf]
      %v498 = vsel %vm399, %v483, %v497
      %499 = vst [vmem:[#allocation2 + $0x24] sm:$0xf] %v498
      %500 = vst.msk [vmem:[#allocation2 + $0x28] sm:$0xf] %vm338, %v492
      %v501 = vld [vmem:[#allocation2 + $0x2c] sm:$0x1]
      %v502 = vsel %vm405, %v493, %v501
      %503 = vst [vmem:[#allocation2 + $0x2c] sm:$0x1] %v502
      %s504 = scalar_lea.vmem %s306, 48
      %v505 = vld [vmem:[%s504] sm:$0xff]
      %v506 = vld [vmem:[%s504 + $0x8] sm:$0xff]
      %v507 = vpack.c.bf16 %v505, %v505
      %v508 = vpack.c.bf16 %v506, %v506
      %v510 = vshrl.u32 %v507, 16
      %v512 = vrot.slane %v510, 7
      %v513 = vshll.u32 %v507, 16
      %v515 = vor.u32 %v512, %v513
      %v516 = vrot.slane %v512, 4
      %v518 = vshrl.u32 %v508, 16
      %v520 = vrot.slane %v518, 7
      %v521 = vshll.u32 %v508, 16
      %v523 = vor.u32 %v520, %v521
      %v524 = vsel %vm376, %v516, %v523
      %v525 = vrot.slane %v520, 4
      %v529 = vld [vmem:[#allocation2 + $0x30] sm:$0xf]
      %v530 = vsel %vm399, %v515, %v529
      %531 = vst [vmem:[#allocation2 + $0x30] sm:$0xf] %v530
      %532 = vst.msk [vmem:[#allocation2 + $0x34] sm:$0xf] %vm338, %v524
      %v533 = vld [vmem:[#allocation2 + $0x38] sm:$0x1]
      %v534 = vsel %vm405, %v525, %v533
      %535 = vst [vmem:[#allocation2 + $0x38] sm:$0x1] %v534
      %s536 = scalar_lea.vmem %s306, 64
      %v537 = vld [vmem:[%s536] sm:$0xff]
      %v538 = vld [vmem:[%s536 + $0x8] sm:$0xff]
      %v539 = vpack.c.bf16 %v537, %v537
      %v540 = vpack.c.bf16 %v538, %v538
      %v542 = vshrl.u32 %v539, 16
      %v544 = vrot.slane %v542, 7
      %v545 = vshll.u32 %v539, 16
      %v547 = vor.u32 %v544, %v545
      %v548 = vrot.slane %v544, 4
      %v550 = vshrl.u32 %v540, 16
      %v552 = vrot.slane %v550, 7
      %v553 = vshll.u32 %v540, 16
      %v555 = vor.u32 %v552, %v553
      %v556 = vsel %vm376, %v548, %v555
      %v557 = vrot.slane %v552, 4
      %v561 = vld [vmem:[#allocation2 + $0x3c] sm:$0xf]
      %v562 = vsel %vm399, %v547, %v561
      %563 = vst [vmem:[#allocation2 + $0x3c] sm:$0xf] %v562
      %564 = vst.msk [vmem:[#allocation2 + $0x40] sm:$0xf] %vm338, %v556
      %v565 = vld [vmem:[#allocation2 + $0x44] sm:$0x1]
      %v566 = vsel %vm405, %v557, %v565
      %567 = vst [vmem:[#allocation2 + $0x44] sm:$0x1] %v566
      %s568 = scalar_lea.vmem %s306, 80
      %v569 = vld [vmem:[%s568] sm:$0xff]
      %v570 = vld [vmem:[%s568 + $0x8] sm:$0xff]
      %v571 = vpack.c.bf16 %v569, %v569
      %v572 = vpack.c.bf16 %v570, %v570
      %v574 = vshrl.u32 %v571, 16
      %v576 = vrot.slane %v574, 7
      %v577 = vshll.u32 %v571, 16
      %v579 = vor.u32 %v576, %v577
      %v580 = vrot.slane %v576, 4
      %v582 = vshrl.u32 %v572, 16
      %v584 = vrot.slane %v582, 7
      %v585 = vshll.u32 %v572, 16
      %v587 = vor.u32 %v584, %v585
      %v588 = vsel %vm376, %v580, %v587
      %v589 = vrot.slane %v584, 4
      %v593 = vld [vmem:[#allocation2 + $0x48] sm:$0xf]
      %v594 = vsel %vm399, %v579, %v593
      %595 = vst [vmem:[#allocation2 + $0x48] sm:$0xf] %v594
      %596 = vst.msk [vmem:[#allocation2 + $0x4c] sm:$0xf] %vm338, %v588
      %v597 = vld [vmem:[#allocation2 + $0x50] sm:$0x1]
      %v598 = vsel %vm405, %v589, %v597
      %599 = vst [vmem:[#allocation2 + $0x50] sm:$0x1] %v598
      %s600 = scalar_lea.vmem %s306, 96
      %v601 = vld [vmem:[%s600] sm:$0xff]
      %v602 = vld [vmem:[%s600 + $0x8] sm:$0xff]
      %v603 = vpack.c.bf16 %v601, %v601
      %v604 = vpack.c.bf16 %v602, %v602
      %v606 = vshrl.u32 %v603, 16
      %v608 = vrot.slane %v606, 7
      %v609 = vshll.u32 %v603, 16
      %v611 = vor.u32 %v608, %v609
      %v612 = vrot.slane %v608, 4
      %v614 = vshrl.u32 %v604, 16
      %v616 = vrot.slane %v614, 7
      %v617 = vshll.u32 %v604, 16
      %v619 = vor.u32 %v616, %v617
      %v620 = vsel %vm376, %v612, %v619
      %v621 = vrot.slane %v616, 4
      %v625 = vld [vmem:[#allocation2 + $0x54] sm:$0xf]
      %v626 = vsel %vm399, %v611, %v625
      %627 = vst [vmem:[#allocation2 + $0x54] sm:$0xf] %v626
      %628 = vst.msk [vmem:[#allocation2 + $0x58] sm:$0xf] %vm338, %v620
      %v629 = vld [vmem:[#allocation2 + $0x5c] sm:$0x1]
      %v630 = vsel %vm405, %v621, %v629
      %631 = vst [vmem:[#allocation2 + $0x5c] sm:$0x1] %v630
      %s632 = scalar_lea.vmem %s306, 112
      %v633 = vld [vmem:[%s632] sm:$0xff]
      %v634 = vld [vmem:[%s632 + $0x8] sm:$0xff]
      %v635 = vpack.c.bf16 %v633, %v633
      %v636 = vpack.c.bf16 %v634, %v634
      %v638 = vshrl.u32 %v635, 16
      %v640 = vrot.slane %v638, 7
      %v641 = vshll.u32 %v635, 16
      %v643 = vor.u32 %v640, %v641
      %v644 = vrot.slane %v640, 4
      %v646 = vshrl.u32 %v636, 16
      %v648 = vrot.slane %v646, 7
      %v649 = vshll.u32 %v636, 16
      %v651 = vor.u32 %v648, %v649
      %v652 = vsel %vm376, %v644, %v651
      %v653 = vrot.slane %v648, 4
      %v657 = vld [vmem:[#allocation2 + $0x60] sm:$0xf]
      %v658 = vsel %vm399, %v643, %v657
      %659 = vst [vmem:[#allocation2 + $0x60] sm:$0xf] %v658
      %660 = vst.msk [vmem:[#allocation2 + $0x64] sm:$0xf] %vm338, %v652
      %v661 = vld [vmem:[#allocation2 + $0x68] sm:$0x1]
      %v662 = vsel %vm405, %v653, %v661
      %663 = vst [vmem:[#allocation2 + $0x68] sm:$0x1] %v662
      %v664 = vld [vmem:[%s325] sm:$0xff]
      %v665 = vld [vmem:[%s325 + $0x8] sm:$0xff]
      %v666 = vpack.c.bf16 %v664, %v664
      %v667 = vpack.c.bf16 %v665, %v665
      %v669 = vshrl.u32 %v666, 16
      %v671 = vrot.slane %v669, 7
      %v672 = vshll.u32 %v666, 16
      %v674 = vor.u32 %v671, %v672
      %v675 = vrot.slane %v671, 4
      %v677 = vshrl.u32 %v667, 16
      %v679 = vrot.slane %v677, 7
      %v680 = vshll.u32 %v667, 16
      %v682 = vor.u32 %v679, %v680
      %v683 = vsel %vm376, %v675, %v682
      %v684 = vrot.slane %v679, 4
      %v688 = vld [vmem:[#allocation2 + $0x6c] sm:$0xf]
      %v689 = vsel %vm399, %v674, %v688
      %690 = vst [vmem:[#allocation2 + $0x6c] sm:$0xf] %v689
      %691 = vst.msk [vmem:[#allocation2 + $0x70] sm:$0xf] %vm338, %v683
      %v692 = vld [vmem:[#allocation2 + $0x74] sm:$0x1]
      %v693 = vsel %vm405, %v684, %v692
      %694 = vst [vmem:[#allocation2 + $0x74] sm:$0x1] %v693
      %v695 = vld [vmem:[#allocation2] sm:$0xf]
      %v696 = vld [vmem:[#allocation2 + $0x4] sm:$0xf]
      %v697 = vld [vmem:[#allocation2 + $0x8] sm:$0xf]
      %v698 = vld [vmem:[#allocation2 + $0xc] sm:$0xf]
      %v699 = vld [vmem:[#allocation2 + $0x10] sm:$0xf]
      %v700 = vld [vmem:[#allocation2 + $0x14] sm:$0xf]
      %v701 = vld [vmem:[#allocation2 + $0x18] sm:$0xf]
      %v702 = vld [vmem:[#allocation2 + $0x1c] sm:$0xf]
      %v703 = vld [vmem:[#allocation2 + $0x20] sm:$0xf]
      %v704 = vld [vmem:[#allocation2 + $0x24] sm:$0xf]
      %v705 = vld [vmem:[#allocation2 + $0x28] sm:$0xf]
      %v706 = vld [vmem:[#allocation2 + $0x2c] sm:$0xf]
      %v707 = vld [vmem:[#allocation2 + $0x30] sm:$0xf]
      %v708 = vld [vmem:[#allocation2 + $0x34] sm:$0xf]
      %v709 = vld [vmem:[#allocation2 + $0x38] sm:$0xf]
      %v710 = vld [vmem:[#allocation2 + $0x3c] sm:$0xf]
      %v711 = vld [vmem:[#allocation2 + $0x40] sm:$0xf]
      %v712 = vld [vmem:[#allocation2 + $0x44] sm:$0xf]
      %v713 = vld [vmem:[#allocation2 + $0x48] sm:$0xf]
      %v714 = vld [vmem:[#allocation2 + $0x4c] sm:$0xf]
      %v715 = vld [vmem:[#allocation2 + $0x50] sm:$0xf]
      %v716 = vld [vmem:[#allocation2 + $0x54] sm:$0xf]
      %v717 = vld [vmem:[#allocation2 + $0x58] sm:$0xf]
      %v718 = vld [vmem:[#allocation2 + $0x5c] sm:$0xf]
      %v719 = vld [vmem:[#allocation2 + $0x60] sm:$0x1]
      %v720 = vld [vmem:[#allocation2] sm:$0xe]
      %v721 = vld [vmem:[#allocation2 + $0x60] sm:$0xf]
      %v722 = vld [vmem:[#allocation2 + $0x64] sm:$0xf]
      %v723 = vld [vmem:[#allocation2 + $0x68] sm:$0xf]
      %v724 = vld [vmem:[#allocation2 + $0x6c] sm:$0x1]
      %v725 = vld [vmem:[#allocation2 + $0xc] sm:$0xe]
      %v726 = vld [vmem:[#allocation2 + $0x6c] sm:$0xf]
      %v727 = vld [vmem:[#allocation2 + $0x70] sm:$0xf]
      %v728 = vld [vmem:[#allocation2 + $0x74] sm:$0xf]
      %v729 = vld [vmem:[#allocation2 + $0x78] sm:$0x1]
      %v730 = vld [vmem:[#allocation2 + $0x18] sm:$0xe]
      %v755 = vunpack.c.l.b16 %v695
      %v756 = vunpack.c.l.b16 %v696
      %v757 = vunpack.c.l.b16 %v697
      %v758 = vunpack.c.l.b16 %v698
      %v759 = vunpack.c.l.b16 %v699
      %v760 = vunpack.c.l.b16 %v700
      %v761 = vunpack.c.l.b16 %v701
      %v762 = vunpack.c.l.b16 %v702
      %v763 = vunpack.c.l.b16 %v703
      %v764 = vunpack.c.l.b16 %v704
      %v765 = vunpack.c.l.b16 %v705
      %v766 = vunpack.c.l.b16 %v706
      %v767 = vunpack.c.l.b16 %v707
      %v768 = vunpack.c.l.b16 %v708
      %v769 = vunpack.c.l.b16 %v709
      %v770 = vunpack.c.l.b16 %v710
      %v771 = vunpack.c.l.b16 %v711
      %v772 = vunpack.c.l.b16 %v712
      %v773 = vunpack.c.l.b16 %v713
      %v774 = vunpack.c.l.b16 %v714
      %v775 = vunpack.c.l.b16 %v715
      %v776 = vunpack.c.l.b16 %v716
      %v777 = vunpack.c.l.b16 %v717
      %v778 = vunpack.c.l.b16 %v718
      %v779 = vpack.c.b16 %v756, %v755
      %v780 = vpack.c.b16 %v758, %v757
      %v781 = vpack.c.b16 %v760, %v759
      %v782 = vpack.c.b16 %v762, %v761
      %v783 = vpack.c.b16 %v764, %v763
      %v784 = vpack.c.b16 %v766, %v765
      %v785 = vpack.c.b16 %v768, %v767
      %v786 = vpack.c.b16 %v770, %v769
      %v787 = vpack.c.b16 %v772, %v771
      %v788 = vpack.c.b16 %v774, %v773
      %v789 = vpack.c.b16 %v776, %v775
      %v790 = vpack.c.b16 %v778, %v777
      %v792 = vunpack.c.l.b16 %v719
      %v793 = vpack.c.b16 %v792, %v792
      %vm794 = vsmask.f32 7424
      %v796 = vshrl.u32 %v779, 16
      %v798 = vshll.u32 %v779, 16
      %v800 = vrot.slane %v798, 1
      %v801 = vor.u32 %v796, %v800
      %v803 = vshll.u32 %v780, 16
      %v805 = vrot.slane %v803, 1
      %v806 = vsel %vm794, %v801, %v805
      %v807 = vshrl.u32 %v780, 16
      %v809 = vor.u32 %v807, %v805
      %v811 = vshll.u32 %v781, 16
      %v813 = vrot.slane %v811, 1
      %v814 = vsel %vm794, %v809, %v813
      %v815 = vshrl.u32 %v781, 16
      %v817 = vor.u32 %v815, %v813
      %v819 = vshll.u32 %v782, 16
      %v821 = vrot.slane %v819, 1
      %v822 = vsel %vm794, %v817, %v821
      %v823 = vshrl.u32 %v782, 16
      %v825 = vor.u32 %v823, %v821
      %v827 = vshll.u32 %v783, 16
      %v829 = vrot.slane %v827, 1
      %v830 = vsel %vm794, %v825, %v829
      %v831 = vshrl.u32 %v783, 16
      %v833 = vor.u32 %v831, %v829
      %v835 = vshll.u32 %v784, 16
      %v837 = vrot.slane %v835, 1
      %v838 = vsel %vm794, %v833, %v837
      %v839 = vshrl.u32 %v784, 16
      %v841 = vor.u32 %v839, %v837
      %v843 = vshll.u32 %v785, 16
      %v845 = vrot.slane %v843, 1
      %v846 = vsel %vm794, %v841, %v845
      %v847 = vshrl.u32 %v785, 16
      %v849 = vor.u32 %v847, %v845
      %v851 = vshll.u32 %v786, 16
      %v853 = vrot.slane %v851, 1
      %v854 = vsel %vm794, %v849, %v853
      %v855 = vshrl.u32 %v786, 16
      %v857 = vor.u32 %v855, %v853
      %v859 = vshll.u32 %v787, 16
      %v861 = vrot.slane %v859, 1
      %v862 = vsel %vm794, %v857, %v861
      %v863 = vshrl.u32 %v787, 16
      %v865 = vor.u32 %v863, %v861
      %v867 = vshll.u32 %v788, 16
      %v869 = vrot.slane %v867, 1
      %v870 = vsel %vm794, %v865, %v869
      %v871 = vshrl.u32 %v788, 16
      %v873 = vor.u32 %v871, %v869
      %v875 = vshll.u32 %v789, 16
      %v877 = vrot.slane %v875, 1
      %v878 = vsel %vm794, %v873, %v877
      %v879 = vshrl.u32 %v789, 16
      %v881 = vor.u32 %v879, %v877
      %v883 = vshll.u32 %v790, 16
      %v885 = vrot.slane %v883, 1
      %v886 = vsel %vm794, %v881, %v885
      %v887 = vshrl.u32 %v790, 16
      %v889 = vor.u32 %v887, %v885
      %v891 = vshll.u32 %v793, 16
      %v893 = vrot.slane %v891, 1
      %v894 = vsel %vm794, %v889, %v893
      %895 = vrot.lane.b32.xlu0 %v806, 4
      %v896 = vpop.permute.xlu0 %895
      %897 = vrot.lane.b32.xlu0 %v814, 4
      %v898 = vpop.permute.xlu0 %897
      %899 = vrot.lane.b32.xlu0 %v822, 4
      %v900 = vpop.permute.xlu0 %899
      %901 = vrot.lane.b32.xlu0 %v830, 4
      %v902 = vpop.permute.xlu0 %901
      %903 = vrot.lane.b32.xlu0 %v838, 4
      %v904 = vpop.permute.xlu0 %903
      %905 = vrot.lane.b32.xlu0 %v846, 4
      %v906 = vpop.permute.xlu0 %905
      %907 = vrot.lane.b32.xlu0 %v854, 4
      %v908 = vpop.permute.xlu0 %907
      %909 = vrot.lane.b32.xlu0 %v862, 4
      %v910 = vpop.permute.xlu0 %909
      %911 = vrot.lane.b32.xlu0 %v870, 4
      %v912 = vpop.permute.xlu0 %911
      %913 = vrot.lane.b32.xlu0 %v878, 4
      %v914 = vpop.permute.xlu0 %913
      %915 = vrot.lane.b32.xlu0 %v886, 4
      %v916 = vpop.permute.xlu0 %915
      %917 = vrot.lane.b32.xlu0 %v894, 4
      %v918 = vpop.permute.xlu0 %917
      %v920 = vunpack.c.l.b16 %v720
      %v921 = vpack.c.b16 %v756, %v920
      %vm922 = vcmask 1046528
      %v923 = vrot.slane %v921, 1
      %v924 = vrot.slane %v780, 1
      %v925 = vsel %vm922, %v923, %v924
      %v926 = vrot.slane %v781, 1
      %v927 = vsel %vm922, %v924, %v926
      %v928 = vrot.slane %v782, 1
      %v929 = vsel %vm922, %v926, %v928
      %v930 = vrot.slane %v783, 1
      %v931 = vsel %vm922, %v928, %v930
      %v932 = vrot.slane %v784, 1
      %v933 = vsel %vm922, %v930, %v932
      %v934 = vrot.slane %v785, 1
      %v935 = vsel %vm922, %v932, %v934
      %v936 = vrot.slane %v786, 1
      %v937 = vsel %vm922, %v934, %v936
      %v938 = vrot.slane %v787, 1
      %v939 = vsel %vm922, %v936, %v938
      %v940 = vrot.slane %v788, 1
      %v941 = vsel %vm922, %v938, %v940
      %v942 = vrot.slane %v789, 1
      %v943 = vsel %vm922, %v940, %v942
      %v944 = vrot.slane %v790, 1
      %v945 = vsel %vm922, %v942, %v944
      %v946 = vrot.slane %v793, 1
      %v947 = vsel %vm922, %v944, %v946
      %948 = vrot.lane.b32.xlu0 %v925, 8
      %v949 = vpop.permute.xlu0 %948
      %950 = vrot.lane.b32.xlu0 %v927, 8
      %v951 = vpop.permute.xlu0 %950
      %952 = vrot.lane.b32.xlu0 %v929, 8
      %v953 = vpop.permute.xlu0 %952
      %954 = vrot.lane.b32.xlu0 %v931, 8
      %v955 = vpop.permute.xlu0 %954
      %956 = vrot.lane.b32.xlu0 %v933, 8
      %v957 = vpop.permute.xlu0 %956
      %958 = vrot.lane.b32.xlu0 %v935, 8
      %v959 = vpop.permute.xlu0 %958
      %960 = vrot.lane.b32.xlu0 %v937, 8
      %v961 = vpop.permute.xlu0 %960
      %962 = vrot.lane.b32.xlu0 %v939, 8
      %v963 = vpop.permute.xlu0 %962
      %964 = vrot.lane.b32.xlu0 %v941, 8
      %v965 = vpop.permute.xlu0 %964
      %966 = vrot.lane.b32.xlu0 %v943, 8
      %v967 = vpop.permute.xlu0 %966
      %968 = vrot.lane.b32.xlu0 %v945, 8
      %v969 = vpop.permute.xlu0 %968
      %970 = vrot.lane.b32.xlu0 %v947, 8
      %v971 = vpop.permute.xlu0 %970
      %v975 = vunpack.c.l.b16 %v721
      %v976 = vunpack.c.l.b16 %v722
      %v977 = vunpack.c.l.b16 %v723
      %v978 = vpack.c.b16 %v759, %v758
      %v979 = vpack.c.b16 %v761, %v760
      %v980 = vpack.c.b16 %v763, %v762
      %v981 = vpack.c.b16 %v765, %v764
      %v982 = vpack.c.b16 %v767, %v766
      %v983 = vpack.c.b16 %v769, %v768
      %v984 = vpack.c.b16 %v771, %v770
      %v985 = vpack.c.b16 %v773, %v772
      %v986 = vpack.c.b16 %v775, %v774
      %v987 = vpack.c.b16 %v777, %v776
      %v988 = vpack.c.b16 %v975, %v778
      %v989 = vpack.c.b16 %v977, %v976
      %990 = vrot.lane.b32.xlu0 %v978, 12
      %v991 = vpop.permute.xlu0 %990
      %992 = vrot.lane.b32.xlu0 %v979, 12
      %v993 = vpop.permute.xlu0 %992
      %994 = vrot.lane.b32.xlu0 %v980, 12
      %v995 = vpop.permute.xlu0 %994
      %996 = vrot.lane.b32.xlu0 %v981, 12
      %v997 = vpop.permute.xlu0 %996
      %998 = vrot.lane.b32.xlu0 %v982, 12
      %v999 = vpop.permute.xlu0 %998
      %1000 = vrot.lane.b32.xlu0 %v983, 12
      %v1001 = vpop.permute.xlu0 %1000
      %1002 = vrot.lane.b32.xlu0 %v984, 12
      %v1003 = vpop.permute.xlu0 %1002
      %1004 = vrot.lane.b32.xlu0 %v985, 12
      %v1005 = vpop.permute.xlu0 %1004
      %1006 = vrot.lane.b32.xlu0 %v986, 12
      %v1007 = vpop.permute.xlu0 %1006
      %1008 = vrot.lane.b32.xlu0 %v987, 12
      %v1009 = vpop.permute.xlu0 %1008
      %1010 = vrot.lane.b32.xlu0 %v988, 12
      %v1011 = vpop.permute.xlu0 %1010
      %1012 = vrot.lane.b32.xlu0 %v989, 12
      %v1013 = vpop.permute.xlu0 %1012
      %v1015 = vunpack.c.l.b16 %v724
      %v1016 = vpack.c.b16 %v1015, %v1015
      %v1018 = vshrl.u32 %v978, 16
      %v1020 = vshll.u32 %v978, 16
      %v1022 = vrot.slane %v1020, 1
      %v1023 = vor.u32 %v1018, %v1022
      %v1025 = vshll.u32 %v979, 16
      %v1027 = vrot.slane %v1025, 1
      %v1028 = vsel %vm794, %v1023, %v1027
      %v1029 = vshrl.u32 %v979, 16
      %v1031 = vor.u32 %v1029, %v1027
      %v1033 = vshll.u32 %v980, 16
      %v1035 = vrot.slane %v1033, 1
      %v1036 = vsel %vm794, %v1031, %v1035
      %v1037 = vshrl.u32 %v980, 16
      %v1039 = vor.u32 %v1037, %v1035
      %v1041 = vshll.u32 %v981, 16
      %v1043 = vrot.slane %v1041, 1
      %v1044 = vsel %vm794, %v1039, %v1043
      %v1045 = vshrl.u32 %v981, 16
      %v1047 = vor.u32 %v1045, %v1043
      %v1049 = vshll.u32 %v982, 16
      %v1051 = vrot.slane %v1049, 1
      %v1052 = vsel %vm794, %v1047, %v1051
      %v1053 = vshrl.u32 %v982, 16
      %v1055 = vor.u32 %v1053, %v1051
      %v1057 = vshll.u32 %v983, 16
      %v1059 = vrot.slane %v1057, 1
      %v1060 = vsel %vm794, %v1055, %v1059
      %v1061 = vshrl.u32 %v983, 16
      %v1063 = vor.u32 %v1061, %v1059
      %v1065 = vshll.u32 %v984, 16
      %v1067 = vrot.slane %v1065, 1
      %v1068 = vsel %vm794, %v1063, %v1067
      %v1069 = vshrl.u32 %v984, 16
      %v1071 = vor.u32 %v1069, %v1067
      %v1073 = vshll.u32 %v985, 16
      %v1075 = vrot.slane %v1073, 1
      %v1076 = vsel %vm794, %v1071, %v1075
      %v1077 = vshrl.u32 %v985, 16
      %v1079 = vor.u32 %v1077, %v1075
      %v1081 = vshll.u32 %v986, 16
      %v1083 = vrot.slane %v1081, 1
      %v1084 = vsel %vm794, %v1079, %v1083
      %v1085 = vshrl.u32 %v986, 16
      %v1087 = vor.u32 %v1085, %v1083
      %v1089 = vshll.u32 %v987, 16
      %v1091 = vrot.slane %v1089, 1
      %v1092 = vsel %vm794, %v1087, %v1091
      %v1093 = vshrl.u32 %v987, 16
      %v1095 = vor.u32 %v1093, %v1091
      %v1097 = vshll.u32 %v988, 16
      %v1099 = vrot.slane %v1097, 1
      %v1100 = vsel %vm794, %v1095, %v1099
      %v1101 = vshrl.u32 %v988, 16
      %v1103 = vor.u32 %v1101, %v1099
      %v1105 = vshll.u32 %v989, 16
      %v1107 = vrot.slane %v1105, 1
      %v1108 = vsel %vm794, %v1103, %v1107
      %v1109 = vshrl.u32 %v989, 16
      %v1111 = vor.u32 %v1109, %v1107
      %v1113 = vshll.u32 %v1016, 16
      %v1115 = vrot.slane %v1113, 1
      %v1116 = vsel %vm794, %v1111, %v1115
      %1117 = vrot.lane.b32.xlu0 %v1028, 16
      %v1118 = vpop.permute.xlu0 %1117
      %1119 = vrot.lane.b32.xlu0 %v1036, 16
      %v1120 = vpop.permute.xlu0 %1119
      %1121 = vrot.lane.b32.xlu0 %v1044, 16
      %v1122 = vpop.permute.xlu0 %1121
      %1123 = vrot.lane.b32.xlu0 %v1052, 16
      %v1124 = vpop.permute.xlu0 %1123
      %1125 = vrot.lane.b32.xlu0 %v1060, 16
      %v1126 = vpop.permute.xlu0 %1125
      %1127 = vrot.lane.b32.xlu0 %v1068, 16
      %v1128 = vpop.permute.xlu0 %1127
      %1129 = vrot.lane.b32.xlu0 %v1076, 16
      %v1130 = vpop.permute.xlu0 %1129
      %1131 = vrot.lane.b32.xlu0 %v1084, 16
      %v1132 = vpop.permute.xlu0 %1131
      %1133 = vrot.lane.b32.xlu0 %v1092, 16
      %v1134 = vpop.permute.xlu0 %1133
      %1135 = vrot.lane.b32.xlu0 %v1100, 16
      %v1136 = vpop.permute.xlu0 %1135
      %1137 = vrot.lane.b32.xlu0 %v1108, 16
      %v1138 = vpop.permute.xlu0 %1137
      %1139 = vrot.lane.b32.xlu0 %v1116, 16
      %v1140 = vpop.permute.xlu0 %1139
      %v1142 = vunpack.c.l.b16 %v725
      %v1143 = vpack.c.b16 %v759, %v1142
      %v1144 = vrot.slane %v1143, 1
      %v1145 = vrot.slane %v979, 1
      %v1146 = vsel %vm922, %v1144, %v1145
      %v1147 = vrot.slane %v980, 1
      %v1148 = vsel %vm922, %v1145, %v1147
      %v1149 = vrot.slane %v981, 1
      %v1150 = vsel %vm922, %v1147, %v1149
      %v1151 = vrot.slane %v982, 1
      %v1152 = vsel %vm922, %v1149, %v1151
      %v1153 = vrot.slane %v983, 1
      %v1154 = vsel %vm922, %v1151, %v1153
      %v1155 = vrot.slane %v984, 1
      %v1156 = vsel %vm922, %v1153, %v1155
      %v1157 = vrot.slane %v985, 1
      %v1158 = vsel %vm922, %v1155, %v1157
      %v1159 = vrot.slane %v986, 1
      %v1160 = vsel %vm922, %v1157, %v1159
      %v1161 = vrot.slane %v987, 1
      %v1162 = vsel %vm922, %v1159, %v1161
      %v1163 = vrot.slane %v988, 1
      %v1164 = vsel %vm922, %v1161, %v1163
      %v1165 = vrot.slane %v989, 1
      %v1166 = vsel %vm922, %v1163, %v1165
      %v1167 = vrot.slane %v1016, 1
      %v1168 = vsel %vm922, %v1165, %v1167
      %1169 = vrot.lane.b32.xlu0 %v1146, 20
      %v1170 = vpop.permute.xlu0 %1169
      %1171 = vrot.lane.b32.xlu0 %v1148, 20
      %v1172 = vpop.permute.xlu0 %1171
      %1173 = vrot.lane.b32.xlu0 %v1150, 20
      %v1174 = vpop.permute.xlu0 %1173
      %1175 = vrot.lane.b32.xlu0 %v1152, 20
      %v1176 = vpop.permute.xlu0 %1175
      %1177 = vrot.lane.b32.xlu0 %v1154, 20
      %v1178 = vpop.permute.xlu0 %1177
      %1179 = vrot.lane.b32.xlu0 %v1156, 20
      %v1180 = vpop.permute.xlu0 %1179
      %1181 = vrot.lane.b32.xlu0 %v1158, 20
      %v1182 = vpop.permute.xlu0 %1181
      %1183 = vrot.lane.b32.xlu0 %v1160, 20
      %v1184 = vpop.permute.xlu0 %1183
      %1185 = vrot.lane.b32.xlu0 %v1162, 20
      %v1186 = vpop.permute.xlu0 %1185
      %1187 = vrot.lane.b32.xlu0 %v1164, 20
      %v1188 = vpop.permute.xlu0 %1187
      %1189 = vrot.lane.b32.xlu0 %v1166, 20
      %v1190 = vpop.permute.xlu0 %1189
      %1191 = vrot.lane.b32.xlu0 %v1168, 20
      %v1192 = vpop.permute.xlu0 %1191
      %v1196 = vunpack.c.l.b16 %v726
      %v1197 = vunpack.c.l.b16 %v727
      %v1198 = vunpack.c.l.b16 %v728
      %v1199 = vpack.c.b16 %v976, %v975
      %v1200 = vpack.c.b16 %v1196, %v977
      %v1201 = vpack.c.b16 %v1198, %v1197
      %1202 = vrot.lane.b32.xlu0 %v782, 24
      %v1203 = vpop.permute.xlu0 %1202
      %1204 = vrot.lane.b32.xlu0 %v783, 24
      %v1205 = vpop.permute.xlu0 %1204
      %1206 = vrot.lane.b32.xlu0 %v784, 24
      %v1207 = vpop.permute.xlu0 %1206
      %1208 = vrot.lane.b32.xlu0 %v785, 24
      %v1209 = vpop.permute.xlu0 %1208
      %1210 = vrot.lane.b32.xlu0 %v786, 24
      %v1211 = vpop.permute.xlu0 %1210
      %1212 = vrot.lane.b32.xlu0 %v787, 24
      %v1213 = vpop.permute.xlu0 %1212
      %1214 = vrot.lane.b32.xlu0 %v788, 24
      %v1215 = vpop.permute.xlu0 %1214
      %1216 = vrot.lane.b32.xlu0 %v789, 24
      %v1217 = vpop.permute.xlu0 %1216
      %1218 = vrot.lane.b32.xlu0 %v790, 24
      %v1219 = vpop.permute.xlu0 %1218
      %1220 = vrot.lane.b32.xlu0 %v1199, 24
      %v1221 = vpop.permute.xlu0 %1220
      %1222 = vrot.lane.b32.xlu0 %v1200, 24
      %v1223 = vpop.permute.xlu0 %1222
      %1224 = vrot.lane.b32.xlu0 %v1201, 24
      %v1225 = vpop.permute.xlu0 %1224
      %v1227 = vunpack.c.l.b16 %v729
      %v1228 = vpack.c.b16 %v1227, %v1227
      %v1230 = vshll.u32 %v1199, 16
      %v1232 = vrot.slane %v1230, 1
      %v1233 = vsel %vm794, %v889, %v1232
      %v1234 = vshrl.u32 %v1199, 16
      %v1236 = vor.u32 %v1234, %v1232
      %v1238 = vshll.u32 %v1200, 16
      %v1240 = vrot.slane %v1238, 1
      %v1241 = vsel %vm794, %v1236, %v1240
      %v1242 = vshrl.u32 %v1200, 16
      %v1244 = vor.u32 %v1242, %v1240
      %v1246 = vshll.u32 %v1201, 16
      %v1248 = vrot.slane %v1246, 1
      %v1249 = vsel %vm794, %v1244, %v1248
      %v1250 = vshrl.u32 %v1201, 16
      %v1252 = vor.u32 %v1250, %v1248
      %v1254 = vshll.u32 %v1228, 16
      %v1256 = vrot.slane %v1254, 1
      %v1257 = vsel %vm794, %v1252, %v1256
      %1258 = vrot.lane.b32.xlu0 %v830, 28
      %v1259 = vpop.permute.xlu0 %1258
      %1260 = vrot.lane.b32.xlu0 %v838, 28
      %v1261 = vpop.permute.xlu0 %1260
      %1262 = vrot.lane.b32.xlu0 %v846, 28
      %v1263 = vpop.permute.xlu0 %1262
      %1264 = vrot.lane.b32.xlu0 %v854, 28
      %v1265 = vpop.permute.xlu0 %1264
      %1266 = vrot.lane.b32.xlu0 %v862, 28
      %v1267 = vpop.permute.xlu0 %1266
      %1268 = vrot.lane.b32.xlu0 %v870, 28
      %v1269 = vpop.permute.xlu0 %1268
      %1270 = vrot.lane.b32.xlu0 %v878, 28
      %v1271 = vpop.permute.xlu0 %1270
      %1272 = vrot.lane.b32.xlu0 %v886, 28
      %v1273 = vpop.permute.xlu0 %1272
      %1274 = vrot.lane.b32.xlu0 %v1233, 28
      %v1275 = vpop.permute.xlu0 %1274
      %1276 = vrot.lane.b32.xlu0 %v1241, 28
      %v1277 = vpop.permute.xlu0 %1276
      %1278 = vrot.lane.b32.xlu0 %v1249, 28
      %v1279 = vpop.permute.xlu0 %1278
      %1280 = vrot.lane.b32.xlu0 %v1257, 28
      %v1281 = vpop.permute.xlu0 %1280
      %v1283 = vunpack.c.l.b16 %v730
      %v1284 = vpack.c.b16 %v762, %v1283
      %v1285 = vrot.slane %v1284, 1
      %v1286 = vsel %vm922, %v1285, %v930
      %v1287 = vrot.slane %v1199, 1
      %v1288 = vsel %vm922, %v944, %v1287
      %v1289 = vrot.slane %v1200, 1
      %v1290 = vsel %vm922, %v1287, %v1289
      %v1291 = vrot.slane %v1201, 1
      %v1292 = vsel %vm922, %v1289, %v1291
      %v1293 = vrot.slane %v1228, 1
      %v1294 = vsel %vm922, %v1291, %v1293
      %1295 = vrot.lane.b32.xlu0 %v1286, 32
      %v1296 = vpop.permute.xlu0 %1295
      %1297 = vrot.lane.b32.xlu0 %v933, 32
      %v1298 = vpop.permute.xlu0 %1297
      %1299 = vrot.lane.b32.xlu0 %v935, 32
      %v1300 = vpop.permute.xlu0 %1299
      %1301 = vrot.lane.b32.xlu0 %v937, 32
      %v1302 = vpop.permute.xlu0 %1301
      %1303 = vrot.lane.b32.xlu0 %v939, 32
      %v1304 = vpop.permute.xlu0 %1303
      %1305 = vrot.lane.b32.xlu0 %v941, 32
      %v1306 = vpop.permute.xlu0 %1305
      %1307 = vrot.lane.b32.xlu0 %v943, 32
      %v1308 = vpop.permute.xlu0 %1307
      %1309 = vrot.lane.b32.xlu0 %v945, 32
      %v1310 = vpop.permute.xlu0 %1309
      %1311 = vrot.lane.b32.xlu0 %v1288, 32
      %v1312 = vpop.permute.xlu0 %1311
      %1313 = vrot.lane.b32.xlu0 %v1290, 32
      %v1314 = vpop.permute.xlu0 %1313
      %1315 = vrot.lane.b32.xlu0 %v1292, 32
      %v1316 = vpop.permute.xlu0 %1315
      %1317 = vrot.lane.b32.xlu0 %v1294, 32
      %v1318 = vpop.permute.xlu0 %1317
      %vm1319 = vcmask 31744
      %v1321 = vsel %vm1319, %v779, %v896
      %v1323 = vsel %vm1319, %v780, %v898
      %v1325 = vsel %vm1319, %v781, %v900
      %v1327 = vsel %vm1319, %v782, %v902
      %v1329 = vsel %vm1319, %v783, %v904
      %v1331 = vsel %vm1319, %v784, %v906
      %v1333 = vsel %vm1319, %v785, %v908
      %v1335 = vsel %vm1319, %v786, %v910
      %v1337 = vsel %vm1319, %v787, %v912
      %v1339 = vsel %vm1319, %v788, %v914
      %v1341 = vsel %vm1319, %v789, %v916
      %v1343 = vsel %vm1319, %v790, %v918
      %vm1344 = vcmask 64512
      %v1346 = vsel %vm1344, %v1321, %v949
      %v1348 = vsel %vm1344, %v1323, %v951
      %v1350 = vsel %vm1344, %v1325, %v953
      %v1352 = vsel %vm1344, %v1327, %v955
      %v1354 = vsel %vm1344, %v1329, %v957
      %v1356 = vsel %vm1344, %v1331, %v959
      %v1358 = vsel %vm1344, %v1333, %v961
      %v1360 = vsel %vm1344, %v1335, %v963
      %v1362 = vsel %vm1344, %v1337, %v965
      %v1364 = vsel %vm1344, %v1339, %v967
      %v1366 = vsel %vm1344, %v1341, %v969
      %v1368 = vsel %vm1344, %v1343, %v971
      %vm1369 = vcmask 97280
      %v1371 = vsel %vm1369, %v1346, %v991
      %v1373 = vsel %vm1369, %v1348, %v993
      %v1375 = vsel %vm1369, %v1350, %v995
      %v1377 = vsel %vm1369, %v1352, %v997
      %v1379 = vsel %vm1369, %v1354, %v999
      %v1381 = vsel %vm1369, %v1356, %v1001
      %v1383 = vsel %vm1369, %v1358, %v1003
      %v1385 = vsel %vm1369, %v1360, %v1005
      %v1387 = vsel %vm1369, %v1362, %v1007
      %v1389 = vsel %vm1369, %v1364, %v1009
      %v1391 = vsel %vm1369, %v1366, %v1011
      %v1393 = vsel %vm1369, %v1368, %v1013
      %vm1394 = vcmask 130048
      %v1396 = vsel %vm1394, %v1371, %v1118
      %v1398 = vsel %vm1394, %v1373, %v1120
      %v1400 = vsel %vm1394, %v1375, %v1122
      %v1402 = vsel %vm1394, %v1377, %v1124
      %v1404 = vsel %vm1394, %v1379, %v1126
      %v1406 = vsel %vm1394, %v1381, %v1128
      %v1408 = vsel %vm1394, %v1383, %v1130
      %v1410 = vsel %vm1394, %v1385, %v1132
      %v1412 = vsel %vm1394, %v1387, %v1134
      %v1414 = vsel %vm1394, %v1389, %v1136
      %v1416 = vsel %vm1394, %v1391, %v1138
      %v1418 = vsel %vm1394, %v1393, %v1140
      %vm1419 = vcmask 162816
      %v1421 = vsel %vm1419, %v1396, %v1170
      %v1423 = vsel %vm1419, %v1398, %v1172
      %v1425 = vsel %vm1419, %v1400, %v1174
      %v1427 = vsel %vm1419, %v1402, %v1176
      %v1429 = vsel %vm1419, %v1404, %v1178
      %v1431 = vsel %vm1419, %v1406, %v1180
      %v1433 = vsel %vm1419, %v1408, %v1182
      %v1435 = vsel %vm1419, %v1410, %v1184
      %v1437 = vsel %vm1419, %v1412, %v1186
      %v1439 = vsel %vm1419, %v1414, %v1188
      %v1441 = vsel %vm1419, %v1416, %v1190
      %v1443 = vsel %vm1419, %v1418, %v1192
      %vm1444 = vcmask 195584
      %v1446 = vsel %vm1444, %v1421, %v1203
      %v1448 = vsel %vm1444, %v1423, %v1205
      %v1450 = vsel %vm1444, %v1425, %v1207
      %v1452 = vsel %vm1444, %v1427, %v1209
      %v1454 = vsel %vm1444, %v1429, %v1211
      %v1456 = vsel %vm1444, %v1431, %v1213
      %v1458 = vsel %vm1444, %v1433, %v1215
      %v1460 = vsel %vm1444, %v1435, %v1217
      %v1462 = vsel %vm1444, %v1437, %v1219
      %v1464 = vsel %vm1444, %v1439, %v1221
      %v1466 = vsel %vm1444, %v1441, %v1223
      %v1468 = vsel %vm1444, %v1443, %v1225
      %vm1469 = vcmask 228352
      %v1471 = vsel %vm1469, %v1446, %v1259
      %v1473 = vsel %vm1469, %v1448, %v1261
      %v1475 = vsel %vm1469, %v1450, %v1263
      %v1477 = vsel %vm1469, %v1452, %v1265
      %v1479 = vsel %vm1469, %v1454, %v1267
      %v1481 = vsel %vm1469, %v1456, %v1269
      %v1483 = vsel %vm1469, %v1458, %v1271
      %v1485 = vsel %vm1469, %v1460, %v1273
      %v1487 = vsel %vm1469, %v1462, %v1275
      %v1489 = vsel %vm1469, %v1464, %v1277
      %v1491 = vsel %vm1469, %v1466, %v1279
      %v1493 = vsel %vm1469, %v1468, %v1281
      %vm1494 = vcmask 261120
      %v1496 = vsel %vm1494, %v1471, %v1296
      %v1498 = vsel %vm1494, %v1473, %v1298
      %v1500 = vsel %vm1494, %v1475, %v1300
      %v1502 = vsel %vm1494, %v1477, %v1302
      %v1504 = vsel %vm1494, %v1479, %v1304
      %v1506 = vsel %vm1494, %v1481, %v1306
      %v1508 = vsel %vm1494, %v1483, %v1308
      %v1510 = vsel %vm1494, %v1485, %v1310
      %v1512 = vsel %vm1494, %v1487, %v1312
      %v1514 = vsel %vm1494, %v1489, %v1314
      %v1516 = vsel %vm1494, %v1491, %v1316
      %v1518 = vsel %vm1494, %v1493, %v1318
      %v1519 = vld [vmem:[%s3] sm:$0xf]
      %v1520 = vld [vmem:[%s3 + $0x4] sm:$0xf]
      %v1521 = vld [vmem:[%s3 + $0x8] sm:$0xf]
      %v1522 = vld [vmem:[%s3 + $0xc] sm:$0xf]
      %v1523 = vld [vmem:[%s3 + $0x10] sm:$0x3]
      %v1524 = vld [vmem:[%s4] sm:$0x1]
      %v1526 = vperm.slane %v1524, 0
      %v1533 = vunpack.c.l.b16 %v1519
      %v1534 = vunpack.c.l.b16 %v1520
      %v1535 = vunpack.c.l.b16 %v1521
      %v1536 = vunpack.c.l.b16 %v1522
      %v1537 = vunpack.c.l.b16 %v1523
      %v1538 = vpack.c.b16 %v1534, %v1533
      %v1539 = vpack.c.b16 %v1536, %v1535
      %v1540 = vpack.c.b16 %v1537, %v1537
      %vm1543 = vcmask 293888
      %v1544 = vsel %vm1543, %v1496, 0
      %v1546 = vsel %vm1543, %v1498, 0
      %v1548 = vsel %vm1543, %v1500, 0
      %v1550 = vsel %vm1543, %v1502, 0
      %v1552 = vsel %vm1543, %v1504, 0
      %v1554 = vsel %vm1543, %v1506, 0
      %v1556 = vsel %vm1543, %v1508, 0
      %v1558 = vsel %vm1543, %v1510, 0
      %v1560 = vsel %vm1543, %v1512, 0
      %v1562 = vsel %vm1543, %v1514, 0
      %v1564 = vsel %vm1543, %v1516, 0
      %v1566 = vsel %vm1543, %v1518, 0
      %vm1568 = vcmask 1041408
      %v1570 = vsel %vm1568, %v1540, 0
      %1572 = vmatpush.bf16.msra.mxu0 0
      %1573 = vmatpush.bf16.msra.mxu0 0
      %1574 = vmatpush.bf16.msra.mxu0 0
      %1575 = vmatpush.bf16.msra.mxu0 0
      %1576 = vmatpush.bf16.msra.mxu0 0
      %1577 = vmatpush.bf16.msra.mxu0 %v1570
      %1578 = vmatpush.bf16.msra.mxu0 %v1539
      %1579 = vmatpush.bf16.msra.mxu0 %v1538
      %1580 = vmatmul.bf16.gmra.mxu0 %v1544
      %v1581 = vpop.f32.mrf.mxu0
      %v1582 = vadd.f32 %v1526, %v1581
      %v1583 = vpop.f32.mrf.mxu0
      %v1584 = vadd.f32 %v1526, %v1583
      %1585 = vmatmul.bf16.gmra.mxu0 %v1546
      %v1586 = vpop.f32.mrf.mxu0
      %v1587 = vpop.f32.mrf.mxu0
      %v1588 = vadd.f32 %v1526, %v1587
      %1589 = vmatmul.bf16.gmra.mxu0 %v1548
      %v1590 = vpop.f32.mrf.mxu0
      %v1591 = vadd.f32 %v1526, %v1590
      %v1592 = vpop.f32.mrf.mxu0
      %1593 = vmatmul.bf16.gmra.mxu0 %v1550
      %v1594 = vpop.f32.mrf.mxu0
      %v1595 = vadd.f32 %v1526, %v1594
      %v1596 = vpop.f32.mrf.mxu0
      %v1597 = vadd.f32 %v1526, %v1596
      %1598 = vmatmul.bf16.gmra.mxu0 %v1552
      %v1599 = vpop.f32.mrf.mxu0
      %v1600 = vpop.f32.mrf.mxu0
      %v1601 = vadd.f32 %v1526, %v1600
      %1602 = vmatmul.bf16.gmra.mxu0 %v1554
      %v1603 = vpop.f32.mrf.mxu0
      %v1604 = vadd.f32 %v1526, %v1603
      %v1605 = vpop.f32.mrf.mxu0
      %1606 = vmatmul.bf16.gmra.mxu0 %v1556
      %v1607 = vpop.f32.mrf.mxu0
      %v1608 = vadd.f32 %v1526, %v1607
      %v1609 = vpop.f32.mrf.mxu0
      %v1610 = vadd.f32 %v1526, %v1609
      %1611 = vmatmul.bf16.gmra.mxu0 %v1558
      %v1612 = vpop.f32.mrf.mxu0
      %v1613 = vpop.f32.mrf.mxu0
      %v1614 = vadd.f32 %v1526, %v1613
      %1615 = vmatmul.bf16.gmra.mxu0 %v1560
      %v1616 = vpop.f32.mrf.mxu0
      %v1617 = vadd.f32 %v1526, %v1616
      %v1618 = vpop.f32.mrf.mxu0
      %1619 = vmatmul.bf16.gmra.mxu0 %v1562
      %v1620 = vpop.f32.mrf.mxu0
      %v1621 = vadd.f32 %v1526, %v1620
      %v1622 = vpop.f32.mrf.mxu0
      %v1623 = vadd.f32 %v1526, %v1622
      %1624 = vmatmul.bf16.gmra.mxu0 %v1564
      %v1625 = vpop.f32.mrf.mxu0
      %v1626 = vpop.f32.mrf.mxu0
      %v1627 = vadd.f32 %v1526, %v1626
      %1628 = vmatmul.bf16.gmra.mxu0 %v1566
      %v1629 = vpop.f32.mrf.mxu0
      %v1630 = vadd.f32 %v1526, %v1629
      %v1631 = vpop.f32.mrf.mxu0
      %1632 = vdwg.mxu0
      %vm1633 = vcmp.ge.f32.partialorder %v1582, 0.0
      %vm1634 = vcmp.ge.f32.partialorder %v1584, 0.0
      %vm1635 = vcmp.ge.f32.partialorder %v1588, 0.0
      %vm1636 = vcmp.ge.f32.partialorder %v1591, 0.0
      %vm1637 = vcmp.ge.f32.partialorder %v1595, 0.0
      %vm1638 = vcmp.ge.f32.partialorder %v1597, 0.0
      %vm1639 = vcmp.ge.f32.partialorder %v1601, 0.0
      %vm1640 = vcmp.ge.f32.partialorder %v1604, 0.0
      %vm1641 = vcmp.ge.f32.partialorder %v1608, 0.0
      %vm1642 = vcmp.ge.f32.partialorder %v1610, 0.0
      %vm1643 = vcmp.ge.f32.partialorder %v1614, 0.0
      %vm1644 = vcmp.ge.f32.partialorder %v1617, 0.0
      %vm1645 = vcmp.ge.f32.partialorder %v1621, 0.0
      %vm1646 = vcmp.ge.f32.partialorder %v1623, 0.0
      %vm1647 = vcmp.ge.f32.partialorder %v1627, 0.0
      %vm1648 = vcmp.ge.f32.partialorder %v1630, 0.0
      %v1649 = vmul.f32 %v1582, 0.2
      %v1650 = vmul.f32 %v1584, 0.2
      %v1651 = vmul.f32 %v1588, 0.2
      %v1652 = vmul.f32 %v1591, 0.2
      %v1653 = vmul.f32 %v1595, 0.2
      %v1654 = vmul.f32 %v1597, 0.2
      %v1655 = vmul.f32 %v1601, 0.2
      %v1656 = vmul.f32 %v1604, 0.2
      %v1657 = vmul.f32 %v1608, 0.2
      %v1658 = vmul.f32 %v1610, 0.2
      %v1659 = vmul.f32 %v1614, 0.2
      %v1660 = vmul.f32 %v1617, 0.2
      %v1661 = vmul.f32 %v1621, 0.2
      %v1662 = vmul.f32 %v1623, 0.2
      %v1663 = vmul.f32 %v1627, 0.2
      %v1664 = vmul.f32 %v1630, 0.2
      %v1665 = vsel %vm1633, %v1582, %v1649
      %v1666 = vsel %vm1634, %v1584, %v1650
      %v1667 = vsel %vm1635, %v1588, %v1651
      %v1668 = vsel %vm1636, %v1591, %v1652
      %v1669 = vsel %vm1637, %v1595, %v1653
      %v1670 = vsel %vm1638, %v1597, %v1654
      %v1671 = vsel %vm1639, %v1601, %v1655
      %v1672 = vsel %vm1640, %v1604, %v1656
      %v1673 = vsel %vm1641, %v1608, %v1657
      %v1674 = vsel %vm1642, %v1610, %v1658
      %v1675 = vsel %vm1643, %v1614, %v1659
      %v1676 = vsel %vm1644, %v1617, %v1660
      %v1677 = vsel %vm1645, %v1621, %v1661
      %v1678 = vsel %vm1646, %v1623, %v1662
      %v1679 = vsel %vm1647, %v1627, %v1663
      %v1680 = vsel %vm1648, %v1630, %v1664
      %1681 = vst.msk [vmem:[%s335] sm:$0xff] %vm1394, %v1665
      %1682 = vst.msk [vmem:[%s335 + $0x8] sm:$0xff] %vm1394, %v1666
      %s1683 = scalar_lea.vmem %s335, 16
      %1684 = vst.msk [vmem:[%s1683] sm:$0xff] %vm1394, %v1667
      %1685 = vst.msk [vmem:[%s1683 + $0x8] sm:$0xff] %vm1394, %v1668
      %s1686 = scalar_lea.vmem %s335, 32
      %1687 = vst.msk [vmem:[%s1686] sm:$0xff] %vm1394, %v1669
      %1688 = vst.msk [vmem:[%s1686 + $0x8] sm:$0xff] %vm1394, %v1670
      %s1689 = scalar_lea.vmem %s335, 48
      %1690 = vst.msk [vmem:[%s1689] sm:$0xff] %vm1394, %v1671
      %1691 = vst.msk [vmem:[%s1689 + $0x8] sm:$0xff] %vm1394, %v1672
      %s1692 = scalar_lea.vmem %s335, 64
      %1693 = vst.msk [vmem:[%s1692] sm:$0xff] %vm1394, %v1673
      %1694 = vst.msk [vmem:[%s1692 + $0x8] sm:$0xff] %vm1394, %v1674
      %s1695 = scalar_lea.vmem %s335, 80
      %1696 = vst.msk [vmem:[%s1695] sm:$0xff] %vm1394, %v1675
      %1697 = vst.msk [vmem:[%s1695 + $0x8] sm:$0xff] %vm1394, %v1676
      %s1698 = scalar_lea.vmem %s335, 96
      %1699 = vst.msk [vmem:[%s1698] sm:$0xff] %vm1394, %v1677
      %1700 = vst.msk [vmem:[%s1698 + $0x8] sm:$0xff] %vm1394, %v1678
      %s1701 = scalar_lea.vmem %s335, 112
      %1702 = vst.msk [vmem:[%s1701] sm:$0xff] %vm1394, %v1679
      %1703 = vst.msk [vmem:[%s1701 + $0x8] sm:$0xff] %vm1394, %v1680
      %s1704 = smul.u32 8, %s21
      %p1705 = scmp.lt.s32.totalorder %s20, 1
      %s1706 = scalar_select %p1705, %s20, 1
      %p1707 = scmp.lt.s32.totalorder %s1704, 15
      %s1708 = scalar_select %p1707, %s1704, 15
      %s1709 = smul.addr %s1708, 2
      %s1710 = smul.addr %s1706, 32
      %s1711 = sadd.s32 %s1709, %s1710
      %s1712 = smul.addr %s1711, 8
      %s1713 = scalar_lea.vmem %s5, %s1712
      // Predicated region
      $region41: #{conv_block.1} parent=39 // pred_check
        %p1714 = pneg %p174
      $region42: #{conv_block.1} parent=39 // pred_check_branch
        %1716 = sbr.rel (%p1714) target = $region44
      $region43: #{conv_block.1} parent=39 // pred_region
        %s1717 = smul.u32 8, %s21
      $region44: #{conv_block.1} parent=39 // pred_fallthru
        _
    $region40: #{conv_block.1} parent=5 // pred_fallthru
      _
    %p1718 = scmp.le.s32.totalorder 2, %s11
    // Predicated region
    $region45: #{conv_block.1} parent=5 // pred_check
      %p1719 = pneg %p1718
    $region46: #{conv_block.1} parent=5 // pred_check_branch
      %1721 = sbr.rel (%p1719) target = $region48
    $region47: #{conv_block.1} parent=5 // pred_region
      %s1722 = ssub.s32 %s11, 2
      // Predicated region
      $region49: #{conv_block.1} parent=47 // pred_check
        %p1723 = pneg %p180
      $region50: #{conv_block.1} parent=47 // pred_check_branch
        %1725 = sbr.rel (%p1723) target = $region52
      $region51: #{conv_block.1} parent=47 // pred_region
        %s1726 = smul.u32 8, %s23
        %p1727 = scmp.lt.s32.totalorder %s22, 1
        %s1728 = scalar_select %p1727, %s22, 1
        %p1729 = scmp.lt.s32.totalorder %s1726, 15
        %s1730 = scalar_select %p1729, %s1726, 15
        %s1731 = smul.addr %s1730, 2
        %s1732 = smul.addr %s1728, 32
        %s1733 = sadd.s32 %s1731, %s1732
        %s1734 = smul.addr %s1733, 8
        %s1735 = scalar_lea.vmem %s5, %s1734
      $region52: #{conv_block.1} parent=47 // pred_fallthru
        _
    $region48: #{conv_block.1} parent=5 // pred_fallthru
      _
  $region6: #{conv_block.1} parent=0 // loop_footer
    %s15 = sadd.s32 1, %s11
  $region7: #{conv_block.1} parent=0 // loop_footer_branch
    %10 = sbr.rel target = $region3
  $region8: #{conv_block.1} parent=0 // loop_exit
    _

</llo_original>
